<compile_context>
chip_gen: v7x
topology: tpu7x:2x2x1
jax: 0.10.0
libtpu: 0.0.40
codegen_flags: <defaults>
</compile_context>

<pallas_src>
import jax
import jax.numpy as jnp
import numpy as np
from jax import lax
from jax.experimental import pallas as pl
from jax.experimental.pallas import tpu as pltpu


def _round_up(n, m):
    return ((n + m - 1) // m) * m


def _make_lstm2_kernel(seq_len, b_pad, hidden, pack):
    H = hidden
    G = 4 * H

    def kernel(x_ref, w_ih0_ref, b0_ref, w_rec_ref, b1_ref,
               out_ref, hn_ref, cn_ref):
        # Loop-invariant per-lane activation constants (computed once; straight-line code).
        col = lax.broadcasted_iota(jnp.int32, (b_pad, G), 1)
        is_g = (col >= 2 * H) & (col < 3 * H)          # lanes [i | f | g | o]
        sc = jnp.where(is_g, 1.0, 0.5).astype(jnp.float32)
        bb = jnp.where(is_g, 0.0, 0.5).astype(jnp.float32)

        def combine(gates, c_prev):
            # One EUP tanh for all 4 gates: sigmoid(x) = 0.5*(1 + tanh(x/2)).
            act = sc * jnp.tanh(sc * gates) + bb       # [sig(i)|sig(f)|tanh(g)|sig(o)]
            i = act[:, 0 * H:1 * H]
            f = act[:, 1 * H:2 * H]
            g = act[:, 2 * H:3 * H]
            o = act[:, 3 * H:4 * H]
            c_new = f * c_prev + i * g
            h_new = o * jnp.tanh(c_new)
            return h_new, c_new

        # Hoisted layer-0 input projection + bias for every timestep: one MXU matmul.
        xp0 = jnp.dot(x_ref[...], w_ih0_ref[...],
                      preferred_element_type=jnp.float32) + b0_ref[...]

        # TODO(synk): drive w_rec weight-stationary (pltpu.matmul_push_rhs /
        #             matmul_acc_lhs / matmul_pop) if the Mosaic dump shows the RHS
        #             push is not hoisted out of the unrolled steps.
        w_rec = w_rec_ref[...]        # (2H, 2G) fused [[Whh0^T, Wih1^T], [0, Whh1^T]]
        b1 = b1_ref[...]              # (1, G) == b_ih1 + b_hh1

        zeros_h = jnp.zeros((b_pad, H), jnp.float32)
        h0, c0 = zeros_h, zeros_h
        h1, c1 = zeros_h, zeros_h

        pend = []  # bounded to `pack` entries, flushed every `pack` steps
        # Wavefront: iteration t computes layer-0 step t and layer-1 step t-1.
        # Fully unrolled straight-line code (toy seq_len); use lax.fori_loop(unroll=4..8)
        # for production seq_len.
        for t in range(seq_len + 1):
            if t == 0:
                rec = jnp.zeros((b_pad, 2 * G), jnp.float32)
            else:
                lhs = jnp.concatenate([h0, h1], axis=1)        # [h0_{t-1} | h1_{t-2}]
                rec = jnp.dot(lhs, w_rec, preferred_element_type=jnp.float32)
            if t >= 1:
                # layer-1 timestep t-1: input proj + recurrence are both in rec[:, G:]
                h1, c1 = combine(rec[:, G:] + b1, c1)
                pend.append(h1)
                if len(pend) == pack:
                    row = pend[0] if pack == 1 else jnp.concatenate(pend, axis=1)
                    out_ref[(t - 1) // pack] = row             # lane-dense store
                    pend = []
            if t < seq_len:
                # layer-0 timestep t
                h0, c0 = combine(xp0[t * b_pad:(t + 1) * b_pad, :] + rec[:, :G], c0)

        hn_ref[0] = h0
        hn_ref[1] = h1
        cn_ref[0] = c0
        cn_ref[1] = c1

    return kernel


def lstm_encoder_forward(x, params):
    """x: (seq, batch, input_size) f32.  params: [(w_ih, w_hh, b_ih, b_hh)] per layer
    in PyTorch layout (w_ih: (4H, in_dim), w_hh: (4H, H), biases: (4H,))."""
    seq_len, batch, input_size = x.shape
    num_layers = len(params)
    if num_layers != 2:
        # TODO(synk): generalize the wavefront to an L-deep pipeline for num_layers != 2.
        raise NotImplementedError("kernel implements the module default num_layers=2")
    hidden = params[0][1].shape[1]
    H, G = hidden, 4 * hidden
    B_pad = _round_up(batch, 8)            # sublane-dense batch
    in_pad = _round_up(input_size, 128)    # lane-dense input features
    pack = 4 if seq_len % 4 == 0 else 1    # timesteps packed per output row

    # x padded to (seq*B_pad, in_pad): batch on sublanes, features on lanes.
    x_p = jnp.zeros((seq_len, B_pad, in_pad), jnp.float32)
    x_p = x_p.at[:, :batch, :input_size].set(x.astype(jnp.float32))
    x_p = x_p.reshape(seq_len * B_pad, in_pad)

    (w_ih0, w_hh0, b_ih0, b_hh0) = [jnp.asarray(a, jnp.float32) for a in params[0]]
    (w_ih1, w_hh1, b_ih1, b_hh1) = [jnp.asarray(a, jnp.float32) for a in params[1]]

    w_ih0_p = jnp.zeros((in_pad, G), jnp.float32).at[:input_size, :].set(w_ih0.T)
    b0 = (b_ih0 + b_hh0)[None, :]
    b1 = (b_ih1 + b_hh1)[None, :]

    # Fused recurrent weight: [h0 | h1] @ w_rec gives
    #   left  G lanes: h0 @ W_hh0^T                      (layer-0 recurrence)
    #   right G lanes: h0 @ W_ih1^T + h1 @ W_hh1^T       (layer-1 input proj + recurrence)
    w_rec = jnp.zeros((2 * H, 2 * G), jnp.float32)
    w_rec = w_rec.at[:H, :G].set(w_hh0.T)
    w_rec = w_rec.at[:H, G:].set(w_ih1.T)
    w_rec = w_rec.at[H:, G:].set(w_hh1.T)

    kernel = _make_lstm2_kernel(seq_len, B_pad, H, pack)
    vmem = pl.BlockSpec(memory_space=pltpu.MemorySpace.VMEM)

    out_shapes = (
        jax.ShapeDtypeStruct((seq_len // pack, B_pad, pack * H), jnp.float32),  # packed lstm_out
        jax.ShapeDtypeStruct((num_layers, B_pad, H), jnp.float32),              # h_n
        jax.ShapeDtypeStruct((num_layers, B_pad, H), jnp.float32),              # c_n
    )

    out_p, hn_p, cn_p = pl.pallas_call(
        kernel,
        out_shape=out_shapes,
        in_specs=[vmem] * 5,
        out_specs=(vmem, vmem, vmem),
    )(x_p, w_ih0_p, b0, w_rec, b1)

    # Unpack: out_p[r, b, q*H:(q+1)*H] == layer-1 output at timestep r*pack + q.
    lstm_out = (out_p[:, :batch, :]
                .reshape(seq_len // pack, batch, pack, H)
                .transpose(0, 2, 1, 3)
                .reshape(seq_len, batch, H))
    h_n = hn_p[:, :batch, :]
    c_n = cn_p[:, :batch, :]
    return lstm_out, (h_n, c_n)


def lstm_reference(x, params):
    """Pure-JAX reference implementing PyTorch nn.LSTM semantics (eval mode)."""
    seq_len, batch, _ = x.shape
    hidden = params[0][1].shape[1]
    inp = x
    h_last, c_last = [], []
    for (w_ih, w_hh, b_ih, b_hh) in params:
        h = jnp.zeros((batch, hidden), jnp.float32)
        c = jnp.zeros((batch, hidden), jnp.float32)
        outs = []
        for t in range(seq_len):
            gates = inp[t] @ w_ih.T + b_ih + h @ w_hh.T + b_hh
            i_g = jax.nn.sigmoid(gates[:, :hidden])
            f_g = jax.nn.sigmoid(gates[:, hidden:2 * hidden])
            g_g = jnp.tanh(gates[:, 2 * hidden:3 * hidden])
            o_g = jax.nn.sigmoid(gates[:, 3 * hidden:])
            c = f_g * c + i_g * g_g
            h = o_g * jnp.tanh(c)
            outs.append(h)
        inp = jnp.stack(outs)
        h_last.append(h)
        c_last.append(c)
    return inp, jnp.stack(h_last), jnp.stack(c_last)


def init_lstm_params(key, input_size, hidden_size, num_layers):
    """Deterministic init mimicking PyTorch's U(-1/sqrt(H), 1/sqrt(H))."""
    bound = 1.0 / (hidden_size ** 0.5)
    params = []
    for layer in range(num_layers):
        in_dim = input_size if layer == 0 else hidden_size
        key, k1, k2, k3, k4 = jax.random.split(key, 5)
        w_ih = jax.random.uniform(k1, (4 * hidden_size, in_dim), jnp.float32, -bound, bound)
        w_hh = jax.random.uniform(k2, (4 * hidden_size, hidden_size), jnp.float32, -bound, bound)
        b_ih = jax.random.uniform(k3, (4 * hidden_size,), jnp.float32, -bound, bound)
        b_hh = jax.random.uniform(k4, (4 * hidden_size,), jnp.float32, -bound, bound)
        params.append((w_ih, w_hh, b_ih, b_hh))
    return params


if __name__ == "__main__":
    seq_len, batch, input_size, hidden_size, num_layers = 8, 2, 16, 32, 2

    key = jax.random.PRNGKey(0)
    kx, kp = jax.random.split(key)
    x = jax.random.normal(kx, (seq_len, batch, input_size), jnp.float32)
    params = init_lstm_params(kp, input_size, hidden_size, num_layers)

    lstm_out, (h_n, c_n) = lstm_encoder_forward(x, params)
    jax.block_until_ready((lstm_out, h_n, c_n))

    ref_out, ref_h, ref_c = lstm_reference(x, params)
    assert lstm_out.shape == (seq_len, batch, hidden_size)
    assert h_n.shape == (num_layers, batch, hidden_size)
    assert c_n.shape == (num_layers, batch, hidden_size)
    np.testing.assert_allclose(np.asarray(lstm_out), np.asarray(ref_out), rtol=1e-4, atol=1e-4)
    np.testing.assert_allclose(np.asarray(h_n), np.asarray(ref_h), rtol=1e-4, atol=1e-4)
    np.testing.assert_allclose(np.asarray(c_n), np.asarray(ref_c), rtol=1e-4, atol=1e-4)

    print("KERNEL_OK")
</pallas_src>

<mosaic_0001>
module attributes {stable_mosaic.version = 11 : i64} {
  func.func @kernel(%arg0: memref<64x128xf32, #tpu.memory_space<vmem>>, %arg1: memref<128x128xf32, #tpu.memory_space<vmem>>, %arg2: memref<1x128xf32, #tpu.memory_space<vmem>>, %arg3: memref<64x256xf32, #tpu.memory_space<vmem>>, %arg4: memref<1x128xf32, #tpu.memory_space<vmem>>, %arg5: memref<2x8x128xf32, #tpu.memory_space<vmem>>, %arg6: memref<2x8x32xf32, #tpu.memory_space<vmem>>, %arg7: memref<2x8x32xf32, #tpu.memory_space<vmem>>) attributes {dimension_semantics = [], scalar_prefetch = 0 : i64, scratch_operands = 0 : i64, tpu.core_type = #tpu.core_type<tc>} {
    %0 = tpu.iota {dimensions = array<i32: 1>} : vector<8x128xi32>
    %c64_i32 = arith.constant 64 : i32
    %1 = vector.broadcast %c64_i32 : i32 to vector<8x128xi32>
    %2 = arith.cmpi sge, %0, %1 : vector<8x128xi32>
    %c96_i32 = arith.constant 96 : i32
    %3 = vector.broadcast %c96_i32 : i32 to vector<8x128xi32>
    %4 = arith.cmpi slt, %0, %3 : vector<8x128xi32>
    %5 = arith.andi %2, %4 : vector<8x128xi1>
    %cst = arith.constant 1.000000e+00 : f32
    %cst_0 = arith.constant 5.000000e-01 : f32
    %6 = vector.broadcast %cst : f32 to vector<8x128xf32>
    %7 = vector.broadcast %cst_0 : f32 to vector<8x128xf32>
    %8 = arith.select %5, %6, %7 : vector<8x128xi1>, vector<8x128xf32>
    %cst_1 = arith.constant 0.000000e+00 : f32
    %cst_2 = arith.constant 5.000000e-01 : f32
    %9 = vector.broadcast %cst_1 : f32 to vector<8x128xf32>
    %10 = vector.broadcast %cst_2 : f32 to vector<8x128xf32>
    %11 = arith.select %5, %9, %10 : vector<8x128xi1>, vector<8x128xf32>
    %c0 = arith.constant 0 : index
    %c0_3 = arith.constant 0 : index
    %12 = vector.load %arg0[%c0, %c0_3] : memref<64x128xf32, #tpu.memory_space<vmem>>, vector<64x128xf32>
    %c0_4 = arith.constant 0 : index
    %c0_5 = arith.constant 0 : index
    %13 = vector.load %arg1[%c0_4, %c0_5] : memref<128x128xf32, #tpu.memory_space<vmem>>, vector<128x128xf32>
    %cst_6 = arith.constant dense<0.000000e+00> : vector<64x128xf32>
    %14 = tpu.matmul %12, %13, %cst_6 {dimension_numbers = #tpu.dot_dimension_numbers<[1], [0], [0], [1], [0, 0, 1, 1], [], []>} : vector<64x128xf32>, vector<128x128xf32>, vector<64x128xf32> -> vector<64x128xf32>
    %c0_7 = arith.constant 0 : index
    %c0_8 = arith.constant 0 : index
    %15 = vector.load %arg2[%c0_7, %c0_8] : memref<1x128xf32, #tpu.memory_space<vmem>>, vector<1x128xf32>
    %16 = vector.broadcast %15 : vector<1x128xf32> to vector<64x128xf32>
    %17 = arith.addf %14, %16 : vector<64x128xf32>
    %c0_9 = arith.constant 0 : index
    %c0_10 = arith.constant 0 : index
    %18 = vector.load %arg3[%c0_9, %c0_10] : memref<64x256xf32, #tpu.memory_space<vmem>>, vector<64x256xf32>
    %c0_11 = arith.constant 0 : index
    %c0_12 = arith.constant 0 : index
    %19 = vector.load %arg4[%c0_11, %c0_12] : memref<1x128xf32, #tpu.memory_space<vmem>>, vector<1x128xf32>
    %cst_13 = arith.constant 0.000000e+00 : f32
    %20 = vector.broadcast %cst_13 : f32 to vector<8x32xf32>
    %cst_14 = arith.constant 0.000000e+00 : f32
    %21 = vector.broadcast %cst_14 : f32 to vector<8x256xf32>
    %22 = vector.extract_strided_slice %17 {offsets = [0, 0], sizes = [8, 128], strides = [1, 1]} : vector<64x128xf32> to vector<8x128xf32>
    %23 = vector.extract_strided_slice %21 {offsets = [0, 0], sizes = [8, 128], strides = [1, 1]} : vector<8x256xf32> to vector<8x128xf32>
    %24 = arith.addf %22, %23 : vector<8x128xf32>
    %25 = arith.mulf %8, %24 : vector<8x128xf32>
    %26 = math.tanh %25 : vector<8x128xf32>
    %27 = arith.mulf %8, %26 : vector<8x128xf32>
    %28 = arith.addf %27, %11 : vector<8x128xf32>
    %29 = vector.extract_strided_slice %28 {offsets = [0, 0], sizes = [8, 32], strides = [1, 1]} : vector<8x128xf32> to vector<8x32xf32>
    %30 = vector.extract_strided_slice %28 {offsets = [0, 32], sizes = [8, 32], strides = [1, 1]} : vector<8x128xf32> to vector<8x32xf32>
    %31 = vector.extract_strided_slice %28 {offsets = [0, 64], sizes = [8, 32], strides = [1, 1]} : vector<8x128xf32> to vector<8x32xf32>
    %32 = vector.extract_strided_slice %28 {offsets = [0, 96], sizes = [8, 32], strides = [1, 1]} : vector<8x128xf32> to vector<8x32xf32>
    %33 = arith.mulf %30, %20 : vector<8x32xf32>
    %34 = arith.mulf %29, %31 : vector<8x32xf32>
    %35 = arith.addf %33, %34 : vector<8x32xf32>
    %36 = math.tanh %35 : vector<8x32xf32>
    %37 = arith.mulf %32, %36 : vector<8x32xf32>
    %38 = tpu.concatenate %37, %20 in 1 : vector<8x32xf32>, vector<8x32xf32> -> vector<8x64xf32>
    %cst_15 = arith.constant dense<0.000000e+00> : vector<8x256xf32>
    %39 = tpu.matmul %38, %18, %cst_15 {dimension_numbers = #tpu.dot_dimension_numbers<[1], [0], [0], [1], [0, 0, 1, 1], [], []>} : vector<8x64xf32>, vector<64x256xf32>, vector<8x256xf32> -> vector<8x256xf32>
    %40 = vector.extract_strided_slice %39 {offsets = [0, 128], sizes = [8, 128], strides = [1, 1]} : vector<8x256xf32> to vector<8x128xf32>
    %41 = vector.broadcast %19 : vector<1x128xf32> to vector<8x128xf32>
    %42 = arith.addf %40, %41 : vector<8x128xf32>
    %43 = arith.mulf %8, %42 : vector<8x128xf32>
    %44 = math.tanh %43 : vector<8x128xf32>
    %45 = arith.mulf %8, %44 : vector<8x128xf32>
    %46 = arith.addf %45, %11 : vector<8x128xf32>
    %47 = vector.extract_strided_slice %46 {offsets = [0, 0], sizes = [8, 32], strides = [1, 1]} : vector<8x128xf32> to vector<8x32xf32>
    %48 = vector.extract_strided_slice %46 {offsets = [0, 32], sizes = [8, 32], strides = [1, 1]} : vector<8x128xf32> to vector<8x32xf32>
    %49 = vector.extract_strided_slice %46 {offsets = [0, 64], sizes = [8, 32], strides = [1, 1]} : vector<8x128xf32> to vector<8x32xf32>
    %50 = vector.extract_strided_slice %46 {offsets = [0, 96], sizes = [8, 32], strides = [1, 1]} : vector<8x128xf32> to vector<8x32xf32>
    %51 = arith.mulf %48, %20 : vector<8x32xf32>
    %52 = arith.mulf %47, %49 : vector<8x32xf32>
    %53 = arith.addf %51, %52 : vector<8x32xf32>
    %54 = math.tanh %53 : vector<8x32xf32>
    %55 = arith.mulf %50, %54 : vector<8x32xf32>
    %56 = vector.extract_strided_slice %17 {offsets = [8, 0], sizes = [8, 128], strides = [1, 1]} : vector<64x128xf32> to vector<8x128xf32>
    %57 = vector.extract_strided_slice %39 {offsets = [0, 0], sizes = [8, 128], strides = [1, 1]} : vector<8x256xf32> to vector<8x128xf32>
    %58 = arith.addf %56, %57 : vector<8x128xf32>
    %59 = arith.mulf %8, %58 : vector<8x128xf32>
    %60 = math.tanh %59 : vector<8x128xf32>
    %61 = arith.mulf %8, %60 : vector<8x128xf32>
    %62 = arith.addf %61, %11 : vector<8x128xf32>
    %63 = vector.extract_strided_slice %62 {offsets = [0, 0], sizes = [8, 32], strides = [1, 1]} : vector<8x128xf32> to vector<8x32xf32>
    %64 = vector.extract_strided_slice %62 {offsets = [0, 32], sizes = [8, 32], strides = [1, 1]} : vector<8x128xf32> to vector<8x32xf32>
    %65 = vector.extract_strided_slice %62 {offsets = [0, 64], sizes = [8, 32], strides = [1, 1]} : vector<8x128xf32> to vector<8x32xf32>
    %66 = vector.extract_strided_slice %62 {offsets = [0, 96], sizes = [8, 32], strides = [1, 1]} : vector<8x128xf32> to vector<8x32xf32>
    %67 = arith.mulf %64, %35 : vector<8x32xf32>
    %68 = arith.mulf %63, %65 : vector<8x32xf32>
    %69 = arith.addf %67, %68 : vector<8x32xf32>
    %70 = math.tanh %69 : vector<8x32xf32>
    %71 = arith.mulf %66, %70 : vector<8x32xf32>
    %72 = tpu.concatenate %71, %55 in 1 : vector<8x32xf32>, vector<8x32xf32> -> vector<8x64xf32>
    %cst_16 = arith.constant dense<0.000000e+00> : vector<8x256xf32>
    %73 = tpu.matmul %72, %18, %cst_16 {dimension_numbers = #tpu.dot_dimension_numbers<[1], [0], [0], [1], [0, 0, 1, 1], [], []>} : vector<8x64xf32>, vector<64x256xf32>, vector<8x256xf32> -> vector<8x256xf32>
    %74 = vector.extract_strided_slice %73 {offsets = [0, 128], sizes = [8, 128], strides = [1, 1]} : vector<8x256xf32> to vector<8x128xf32>
    %75 = vector.broadcast %19 : vector<1x128xf32> to vector<8x128xf32>
    %76 = arith.addf %74, %75 : vector<8x128xf32>
    %77 = arith.mulf %8, %76 : vector<8x128xf32>
    %78 = math.tanh %77 : vector<8x128xf32>
    %79 = arith.mulf %8, %78 : vector<8x128xf32>
    %80 = arith.addf %79, %11 : vector<8x128xf32>
    %81 = vector.extract_strided_slice %80 {offsets = [0, 0], sizes = [8, 32], strides = [1, 1]} : vector<8x128xf32> to vector<8x32xf32>
    %82 = vector.extract_strided_slice %80 {offsets = [0, 32], sizes = [8, 32], strides = [1, 1]} : vector<8x128xf32> to vector<8x32xf32>
    %83 = vector.extract_strided_slice %80 {offsets = [0, 64], sizes = [8, 32], strides = [1, 1]} : vector<8x128xf32> to vector<8x32xf32>
    %84 = vector.extract_strided_slice %80 {offsets = [0, 96], sizes = [8, 32], strides = [1, 1]} : vector<8x128xf32> to vector<8x32xf32>
    %85 = arith.mulf %82, %53 : vector<8x32xf32>
    %86 = arith.mulf %81, %83 : vector<8x32xf32>
    %87 = arith.addf %85, %86 : vector<8x32xf32>
    %88 = math.tanh %87 : vector<8x32xf32>
    %89 = arith.mulf %84, %88 : vector<8x32xf32>
    %90 = vector.extract_strided_slice %17 {offsets = [16, 0], sizes = [8, 128], strides = [1, 1]} : vector<64x128xf32> to vector<8x128xf32>
    %91 = vector.extract_strided_slice %73 {offsets = [0, 0], sizes = [8, 128], strides = [1, 1]} : vector<8x256xf32> to vector<8x128xf32>
    %92 = arith.addf %90, %91 : vector<8x128xf32>
    %93 = arith.mulf %8, %92 : vector<8x128xf32>
    %94 = math.tanh %93 : vector<8x128xf32>
    %95 = arith.mulf %8, %94 : vector<8x128xf32>
    %96 = arith.addf %95, %11 : vector<8x128xf32>
    %97 = vector.extract_strided_slice %96 {offsets = [0, 0], sizes = [8, 32], strides = [1, 1]} : vector<8x128xf32> to vector<8x32xf32>
    %98 = vector.extract_strided_slice %96 {offsets = [0, 32], sizes = [8, 32], strides = [1, 1]} : vector<8x128xf32> to vector<8x32xf32>
    %99 = vector.extract_strided_slice %96 {offsets = [0, 64], sizes = [8, 32], strides = [1, 1]} : vector<8x128xf32> to vector<8x32xf32>
    %100 = vector.extract_strided_slice %96 {offsets = [0, 96], sizes = [8, 32], strides = [1, 1]} : vector<8x128xf32> to vector<8x32xf32>
    %101 = arith.mulf %98, %69 : vector<8x32xf32>
    %102 = arith.mulf %97, %99 : vector<8x32xf32>
    %103 = arith.addf %101, %102 : vector<8x32xf32>
    %104 = math.tanh %103 : vector<8x32xf32>
    %105 = arith.mulf %100, %104 : vector<8x32xf32>
    %106 = tpu.concatenate %105, %89 in 1 : vector<8x32xf32>, vector<8x32xf32> -> vector<8x64xf32>
    %cst_17 = arith.constant dense<0.000000e+00> : vector<8x256xf32>
    %107 = tpu.matmul %106, %18, %cst_17 {dimension_numbers = #tpu.dot_dimension_numbers<[1], [0], [0], [1], [0, 0, 1, 1], [], []>} : vector<8x64xf32>, vector<64x256xf32>, vector<8x256xf32> -> vector<8x256xf32>
    %108 = vector.extract_strided_slice %107 {offsets = [0, 128], sizes = [8, 128], strides = [1, 1]} : vector<8x256xf32> to vector<8x128xf32>
    %109 = vector.broadcast %19 : vector<1x128xf32> to vector<8x128xf32>
    %110 = arith.addf %108, %109 : vector<8x128xf32>
    %111 = arith.mulf %8, %110 : vector<8x128xf32>
    %112 = math.tanh %111 : vector<8x128xf32>
    %113 = arith.mulf %8, %112 : vector<8x128xf32>
    %114 = arith.addf %113, %11 : vector<8x128xf32>
    %115 = vector.extract_strided_slice %114 {offsets = [0, 0], sizes = [8, 32], strides = [1, 1]} : vector<8x128xf32> to vector<8x32xf32>
    %116 = vector.extract_strided_slice %114 {offsets = [0, 32], sizes = [8, 32], strides = [1, 1]} : vector<8x128xf32> to vector<8x32xf32>
    %117 = vector.extract_strided_slice %114 {offsets = [0, 64], sizes = [8, 32], strides = [1, 1]} : vector<8x128xf32> to vector<8x32xf32>
    %118 = vector.extract_strided_slice %114 {offsets = [0, 96], sizes = [8, 32], strides = [1, 1]} : vector<8x128xf32> to vector<8x32xf32>
    %119 = arith.mulf %116, %87 : vector<8x32xf32>
    %120 = arith.mulf %115, %117 : vector<8x32xf32>
    %121 = arith.addf %119, %120 : vector<8x32xf32>
    %122 = math.tanh %121 : vector<8x32xf32>
    %123 = arith.mulf %118, %122 : vector<8x32xf32>
    %124 = vector.extract_strided_slice %17 {offsets = [24, 0], sizes = [8, 128], strides = [1, 1]} : vector<64x128xf32> to vector<8x128xf32>
    %125 = vector.extract_strided_slice %107 {offsets = [0, 0], sizes = [8, 128], strides = [1, 1]} : vector<8x256xf32> to vector<8x128xf32>
    %126 = arith.addf %124, %125 : vector<8x128xf32>
    %127 = arith.mulf %8, %126 : vector<8x128xf32>
    %128 = math.tanh %127 : vector<8x128xf32>
    %129 = arith.mulf %8, %128 : vector<8x128xf32>
    %130 = arith.addf %129, %11 : vector<8x128xf32>
    %131 = vector.extract_strided_slice %130 {offsets = [0, 0], sizes = [8, 32], strides = [1, 1]} : vector<8x128xf32> to vector<8x32xf32>
    %132 = vector.extract_strided_slice %130 {offsets = [0, 32], sizes = [8, 32], strides = [1, 1]} : vector<8x128xf32> to vector<8x32xf32>
    %133 = vector.extract_strided_slice %130 {offsets = [0, 64], sizes = [8, 32], strides = [1, 1]} : vector<8x128xf32> to vector<8x32xf32>
    %134 = vector.extract_strided_slice %130 {offsets = [0, 96], sizes = [8, 32], strides = [1, 1]} : vector<8x128xf32> to vector<8x32xf32>
    %135 = arith.mulf %132, %103 : vector<8x32xf32>
    %136 = arith.mulf %131, %133 : vector<8x32xf32>
    %137 = arith.addf %135, %136 : vector<8x32xf32>
    %138 = math.tanh %137 : vector<8x32xf32>
    %139 = arith.mulf %134, %138 : vector<8x32xf32>
    %140 = tpu.concatenate %139, %123 in 1 : vector<8x32xf32>, vector<8x32xf32> -> vector<8x64xf32>
    %cst_18 = arith.constant dense<0.000000e+00> : vector<8x256xf32>
    %141 = tpu.matmul %140, %18, %cst_18 {dimension_numbers = #tpu.dot_dimension_numbers<[1], [0], [0], [1], [0, 0, 1, 1], [], []>} : vector<8x64xf32>, vector<64x256xf32>, vector<8x256xf32> -> vector<8x256xf32>
    %142 = vector.extract_strided_slice %141 {offsets = [0, 128], sizes = [8, 128], strides = [1, 1]} : vector<8x256xf32> to vector<8x128xf32>
    %143 = vector.broadcast %19 : vector<1x128xf32> to vector<8x128xf32>
    %144 = arith.addf %142, %143 : vector<8x128xf32>
    %145 = arith.mulf %8, %144 : vector<8x128xf32>
    %146 = math.tanh %145 : vector<8x128xf32>
    %147 = arith.mulf %8, %146 : vector<8x128xf32>
    %148 = arith.addf %147, %11 : vector<8x128xf32>
    %149 = vector.extract_strided_slice %148 {offsets = [0, 0], sizes = [8, 32], strides = [1, 1]} : vector<8x128xf32> to vector<8x32xf32>
    %150 = vector.extract_strided_slice %148 {offsets = [0, 32], sizes = [8, 32], strides = [1, 1]} : vector<8x128xf32> to vector<8x32xf32>
    %151 = vector.extract_strided_slice %148 {offsets = [0, 64], sizes = [8, 32], strides = [1, 1]} : vector<8x128xf32> to vector<8x32xf32>
    %152 = vector.extract_strided_slice %148 {offsets = [0, 96], sizes = [8, 32], strides = [1, 1]} : vector<8x128xf32> to vector<8x32xf32>
    %153 = arith.mulf %150, %121 : vector<8x32xf32>
    %154 = arith.mulf %149, %151 : vector<8x32xf32>
    %155 = arith.addf %153, %154 : vector<8x32xf32>
    %156 = math.tanh %155 : vector<8x32xf32>
    %157 = arith.mulf %152, %156 : vector<8x32xf32>
    %158 = tpu.concatenate %55, %89, %123, %157 in 1 : vector<8x32xf32>, vector<8x32xf32>, vector<8x32xf32>, vector<8x32xf32> -> vector<8x128xf32>
    %c0_19 = arith.constant 0 : index
    %c0_20 = arith.constant 0 : index
    %c0_21 = arith.constant 0 : index
    %159 = vector.load %arg5[%c0_19, %c0_20, %c0_21] : memref<2x8x128xf32, #tpu.memory_space<vmem>>, vector<1x8x128xf32>
    %160 = vector.shape_cast %159 : vector<1x8x128xf32> to vector<8x128xf32>
    %161 = vector.shape_cast %158 : vector<8x128xf32> to vector<1x8x128xf32>
    tpu.vector_store %arg5[%c0_19, %c0_20, %c0_21], %161 {strides = array<i32>} : memref<2x8x128xf32, #tpu.memory_space<vmem>>, vector<1x8x128xf32>,
    %162 = vector.extract_strided_slice %17 {offsets = [32, 0], sizes = [8, 128], strides = [1, 1]} : vector<64x128xf32> to vector<8x128xf32>
    %163 = vector.extract_strided_slice %141 {offsets = [0, 0], sizes = [8, 128], strides = [1, 1]} : vector<8x256xf32> to vector<8x128xf32>
    %164 = arith.addf %162, %163 : vector<8x128xf32>
    %165 = arith.mulf %8, %164 : vector<8x128xf32>
    %166 = math.tanh %165 : vector<8x128xf32>
    %167 = arith.mulf %8, %166 : vector<8x128xf32>
    %168 = arith.addf %167, %11 : vector<8x128xf32>
    %169 = vector.extract_strided_slice %168 {offsets = [0, 0], sizes = [8, 32], strides = [1, 1]} : vector<8x128xf32> to vector<8x32xf32>
    %170 = vector.extract_strided_slice %168 {offsets = [0, 32], sizes = [8, 32], strides = [1, 1]} : vector<8x128xf32> to vector<8x32xf32>
    %171 = vector.extract_strided_slice %168 {offsets = [0, 64], sizes = [8, 32], strides = [1, 1]} : vector<8x128xf32> to vector<8x32xf32>
    %172 = vector.extract_strided_slice %168 {offsets = [0, 96], sizes = [8, 32], strides = [1, 1]} : vector<8x128xf32> to vector<8x32xf32>
    %173 = arith.mulf %170, %137 : vector<8x32xf32>
    %174 = arith.mulf %169, %171 : vector<8x32xf32>
    %175 = arith.addf %173, %174 : vector<8x32xf32>
    %176 = math.tanh %175 : vector<8x32xf32>
    %177 = arith.mulf %172, %176 : vector<8x32xf32>
    %178 = tpu.concatenate %177, %157 in 1 : vector<8x32xf32>, vector<8x32xf32> -> vector<8x64xf32>
    %cst_22 = arith.constant dense<0.000000e+00> : vector<8x256xf32>
    %179 = tpu.matmul %178, %18, %cst_22 {dimension_numbers = #tpu.dot_dimension_numbers<[1], [0], [0], [1], [0, 0, 1, 1], [], []>} : vector<8x64xf32>, vector<64x256xf32>, vector<8x256xf32> -> vector<8x256xf32>
    %180 = vector.extract_strided_slice %179 {offsets = [0, 128], sizes = [8, 128], strides = [1, 1]} : vector<8x256xf32> to vector<8x128xf32>
    %181 = vector.broadcast %19 : vector<1x128xf32> to vector<8x128xf32>
    %182 = arith.addf %180, %181 : vector<8x128xf32>
    %183 = arith.mulf %8, %182 : vector<8x128xf32>
    %184 = math.tanh %183 : vector<8x128xf32>
    %185 = arith.mulf %8, %184 : vector<8x128xf32>
    %186 = arith.addf %185, %11 : vector<8x128xf32>
    %187 = vector.extract_strided_slice %186 {offsets = [0, 0], sizes = [8, 32], strides = [1, 1]} : vector<8x128xf32> to vector<8x32xf32>
    %188 = vector.extract_strided_slice %186 {offsets = [0, 32], sizes = [8, 32], strides = [1, 1]} : vector<8x128xf32> to vector<8x32xf32>
    %189 = vector.extract_strided_slice %186 {offsets = [0, 64], sizes = [8, 32], strides = [1, 1]} : vector<8x128xf32> to vector<8x32xf32>
    %190 = vector.extract_strided_slice %186 {offsets = [0, 96], sizes = [8, 32], strides = [1, 1]} : vector<8x128xf32> to vector<8x32xf32>
    %191 = arith.mulf %188, %155 : vector<8x32xf32>
    %192 = arith.mulf %187, %189 : vector<8x32xf32>
    %193 = arith.addf %191, %192 : vector<8x32xf32>
    %194 = math.tanh %193 : vector<8x32xf32>
    %195 = arith.mulf %190, %194 : vector<8x32xf32>
    %196 = vector.extract_strided_slice %17 {offsets = [40, 0], sizes = [8, 128], strides = [1, 1]} : vector<64x128xf32> to vector<8x128xf32>
    %197 = vector.extract_strided_slice %179 {offsets = [0, 0], sizes = [8, 128], strides = [1, 1]} : vector<8x256xf32> to vector<8x128xf32>
    %198 = arith.addf %196, %197 : vector<8x128xf32>
    %199 = arith.mulf %8, %198 : vector<8x128xf32>
    %200 = math.tanh %199 : vector<8x128xf32>
    %201 = arith.mulf %8, %200 : vector<8x128xf32>
    %202 = arith.addf %201, %11 : vector<8x128xf32>
    %203 = vector.extract_strided_slice %202 {offsets = [0, 0], sizes = [8, 32], strides = [1, 1]} : vector<8x128xf32> to vector<8x32xf32>
    %204 = vector.extract_strided_slice %202 {offsets = [0, 32], sizes = [8, 32], strides = [1, 1]} : vector<8x128xf32> to vector<8x32xf32>
    %205 = vector.extract_strided_slice %202 {offsets = [0, 64], sizes = [8, 32], strides = [1, 1]} : vector<8x128xf32> to vector<8x32xf32>
    %206 = vector.extract_strided_slice %202 {offsets = [0, 96], sizes = [8, 32], strides = [1, 1]} : vector<8x128xf32> to vector<8x32xf32>
    %207 = arith.mulf %204, %175 : vector<8x32xf32>
    %208 = arith.mulf %203, %205 : vector<8x32xf32>
    %209 = arith.addf %207, %208 : vector<8x32xf32>
    %210 = math.tanh %209 : vector<8x32xf32>
    %211 = arith.mulf %206, %210 : vector<8x32xf32>
    %212 = tpu.concatenate %211, %195 in 1 : vector<8x32xf32>, vector<8x32xf32> -> vector<8x64xf32>
    %cst_23 = arith.constant dense<0.000000e+00> : vector<8x256xf32>
    %213 = tpu.matmul %212, %18, %cst_23 {dimension_numbers = #tpu.dot_dimension_numbers<[1], [0], [0], [1], [0, 0, 1, 1], [], []>} : vector<8x64xf32>, vector<64x256xf32>, vector<8x256xf32> -> vector<8x256xf32>
    %214 = vector.extract_strided_slice %213 {offsets = [0, 128], sizes = [8, 128], strides = [1, 1]} : vector<8x256xf32> to vector<8x128xf32>
    %215 = vector.broadcast %19 : vector<1x128xf32> to vector<8x128xf32>
    %216 = arith.addf %214, %215 : vector<8x128xf32>
    %217 = arith.mulf %8, %216 : vector<8x128xf32>
    %218 = math.tanh %217 : vector<8x128xf32>
    %219 = arith.mulf %8, %218 : vector<8x128xf32>
    %220 = arith.addf %219, %11 : vector<8x128xf32>
    %221 = vector.extract_strided_slice %220 {offsets = [0, 0], sizes = [8, 32], strides = [1, 1]} : vector<8x128xf32> to vector<8x32xf32>
    %222 = vector.extract_strided_slice %220 {offsets = [0, 32], sizes = [8, 32], strides = [1, 1]} : vector<8x128xf32> to vector<8x32xf32>
    %223 = vector.extract_strided_slice %220 {offsets = [0, 64], sizes = [8, 32], strides = [1, 1]} : vector<8x128xf32> to vector<8x32xf32>
    %224 = vector.extract_strided_slice %220 {offsets = [0, 96], sizes = [8, 32], strides = [1, 1]} : vector<8x128xf32> to vector<8x32xf32>
    %225 = arith.mulf %222, %193 : vector<8x32xf32>
    %226 = arith.mulf %221, %223 : vector<8x32xf32>
    %227 = arith.addf %225, %226 : vector<8x32xf32>
    %228 = math.tanh %227 : vector<8x32xf32>
    %229 = arith.mulf %224, %228 : vector<8x32xf32>
    %230 = vector.extract_strided_slice %17 {offsets = [48, 0], sizes = [8, 128], strides = [1, 1]} : vector<64x128xf32> to vector<8x128xf32>
    %231 = vector.extract_strided_slice %213 {offsets = [0, 0], sizes = [8, 128], strides = [1, 1]} : vector<8x256xf32> to vector<8x128xf32>
    %232 = arith.addf %230, %231 : vector<8x128xf32>
    %233 = arith.mulf %8, %232 : vector<8x128xf32>
    %234 = math.tanh %233 : vector<8x128xf32>
    %235 = arith.mulf %8, %234 : vector<8x128xf32>
    %236 = arith.addf %235, %11 : vector<8x128xf32>
    %237 = vector.extract_strided_slice %236 {offsets = [0, 0], sizes = [8, 32], strides = [1, 1]} : vector<8x128xf32> to vector<8x32xf32>
    %238 = vector.extract_strided_slice %236 {offsets = [0, 32], sizes = [8, 32], strides = [1, 1]} : vector<8x128xf32> to vector<8x32xf32>
    %239 = vector.extract_strided_slice %236 {offsets = [0, 64], sizes = [8, 32], strides = [1, 1]} : vector<8x128xf32> to vector<8x32xf32>
    %240 = vector.extract_strided_slice %236 {offsets = [0, 96], sizes = [8, 32], strides = [1, 1]} : vector<8x128xf32> to vector<8x32xf32>
    %241 = arith.mulf %238, %209 : vector<8x32xf32>
    %242 = arith.mulf %237, %239 : vector<8x32xf32>
    %243 = arith.addf %241, %242 : vector<8x32xf32>
    %244 = math.tanh %243 : vector<8x32xf32>
    %245 = arith.mulf %240, %244 : vector<8x32xf32>
    %246 = tpu.concatenate %245, %229 in 1 : vector<8x32xf32>, vector<8x32xf32> -> vector<8x64xf32>
    %cst_24 = arith.constant dense<0.000000e+00> : vector<8x256xf32>
    %247 = tpu.matmul %246, %18, %cst_24 {dimension_numbers = #tpu.dot_dimension_numbers<[1], [0], [0], [1], [0, 0, 1, 1], [], []>} : vector<8x64xf32>, vector<64x256xf32>, vector<8x256xf32> -> vector<8x256xf32>
    %248 = vector.extract_strided_slice %247 {offsets = [0, 128], sizes = [8, 128], strides = [1, 1]} : vector<8x256xf32> to vector<8x128xf32>
    %249 = vector.broadcast %19 : vector<1x128xf32> to vector<8x128xf32>
    %250 = arith.addf %248, %249 : vector<8x128xf32>
    %251 = arith.mulf %8, %250 : vector<8x128xf32>
    %252 = math.tanh %251 : vector<8x128xf32>
    %253 = arith.mulf %8, %252 : vector<8x128xf32>
    %254 = arith.addf %253, %11 : vector<8x128xf32>
    %255 = vector.extract_strided_slice %254 {offsets = [0, 0], sizes = [8, 32], strides = [1, 1]} : vector<8x128xf32> to vector<8x32xf32>
    %256 = vector.extract_strided_slice %254 {offsets = [0, 32], sizes = [8, 32], strides = [1, 1]} : vector<8x128xf32> to vector<8x32xf32>
    %257 = vector.extract_strided_slice %254 {offsets = [0, 64], sizes = [8, 32], strides = [1, 1]} : vector<8x128xf32> to vector<8x32xf32>
    %258 = vector.extract_strided_slice %254 {offsets = [0, 96], sizes = [8, 32], strides = [1, 1]} : vector<8x128xf32> to vector<8x32xf32>
    %259 = arith.mulf %256, %227 : vector<8x32xf32>
    %260 = arith.mulf %255, %257 : vector<8x32xf32>
    %261 = arith.addf %259, %260 : vector<8x32xf32>
    %262 = math.tanh %261 : vector<8x32xf32>
    %263 = arith.mulf %258, %262 : vector<8x32xf32>
    %264 = vector.extract_strided_slice %17 {offsets = [56, 0], sizes = [8, 128], strides = [1, 1]} : vector<64x128xf32> to vector<8x128xf32>
    %265 = vector.extract_strided_slice %247 {offsets = [0, 0], sizes = [8, 128], strides = [1, 1]} : vector<8x256xf32> to vector<8x128xf32>
    %266 = arith.addf %264, %265 : vector<8x128xf32>
    %267 = arith.mulf %8, %266 : vector<8x128xf32>
    %268 = math.tanh %267 : vector<8x128xf32>
    %269 = arith.mulf %8, %268 : vector<8x128xf32>
    %270 = arith.addf %269, %11 : vector<8x128xf32>
    %271 = vector.extract_strided_slice %270 {offsets = [0, 0], sizes = [8, 32], strides = [1, 1]} : vector<8x128xf32> to vector<8x32xf32>
    %272 = vector.extract_strided_slice %270 {offsets = [0, 32], sizes = [8, 32], strides = [1, 1]} : vector<8x128xf32> to vector<8x32xf32>
    %273 = vector.extract_strided_slice %270 {offsets = [0, 64], sizes = [8, 32], strides = [1, 1]} : vector<8x128xf32> to vector<8x32xf32>
    %274 = vector.extract_strided_slice %270 {offsets = [0, 96], sizes = [8, 32], strides = [1, 1]} : vector<8x128xf32> to vector<8x32xf32>
    %275 = arith.mulf %272, %243 : vector<8x32xf32>
    %276 = arith.mulf %271, %273 : vector<8x32xf32>
    %277 = arith.addf %275, %276 : vector<8x32xf32>
    %278 = math.tanh %277 : vector<8x32xf32>
    %279 = arith.mulf %274, %278 : vector<8x32xf32>
    %280 = tpu.concatenate %279, %263 in 1 : vector<8x32xf32>, vector<8x32xf32> -> vector<8x64xf32>
    %cst_25 = arith.constant dense<0.000000e+00> : vector<8x256xf32>
    %281 = tpu.matmul %280, %18, %cst_25 {dimension_numbers = #tpu.dot_dimension_numbers<[1], [0], [0], [1], [0, 0, 1, 1], [], []>} : vector<8x64xf32>, vector<64x256xf32>, vector<8x256xf32> -> vector<8x256xf32>
    %282 = vector.extract_strided_slice %281 {offsets = [0, 128], sizes = [8, 128], strides = [1, 1]} : vector<8x256xf32> to vector<8x128xf32>
    %283 = vector.broadcast %19 : vector<1x128xf32> to vector<8x128xf32>
    %284 = arith.addf %282, %283 : vector<8x128xf32>
    %285 = arith.mulf %8, %284 : vector<8x128xf32>
    %286 = math.tanh %285 : vector<8x128xf32>
    %287 = arith.mulf %8, %286 : vector<8x128xf32>
    %288 = arith.addf %287, %11 : vector<8x128xf32>
    %289 = vector.extract_strided_slice %288 {offsets = [0, 0], sizes = [8, 32], strides = [1, 1]} : vector<8x128xf32> to vector<8x32xf32>
    %290 = vector.extract_strided_slice %288 {offsets = [0, 32], sizes = [8, 32], strides = [1, 1]} : vector<8x128xf32> to vector<8x32xf32>
    %291 = vector.extract_strided_slice %288 {offsets = [0, 64], sizes = [8, 32], strides = [1, 1]} : vector<8x128xf32> to vector<8x32xf32>
    %292 = vector.extract_strided_slice %288 {offsets = [0, 96], sizes = [8, 32], strides = [1, 1]} : vector<8x128xf32> to vector<8x32xf32>
    %293 = arith.mulf %290, %261 : vector<8x32xf32>
    %294 = arith.mulf %289, %291 : vector<8x32xf32>
    %295 = arith.addf %293, %294 : vector<8x32xf32>
    %296 = math.tanh %295 : vector<8x32xf32>
    %297 = arith.mulf %292, %296 : vector<8x32xf32>
    %298 = tpu.concatenate %195, %229, %263, %297 in 1 : vector<8x32xf32>, vector<8x32xf32>, vector<8x32xf32>, vector<8x32xf32> -> vector<8x128xf32>
    %c1 = arith.constant 1 : index
    %c0_26 = arith.constant 0 : index
    %c0_27 = arith.constant 0 : index
    %299 = vector.load %arg5[%c1, %c0_26, %c0_27] : memref<2x8x128xf32, #tpu.memory_space<vmem>>, vector<1x8x128xf32>
    %300 = vector.shape_cast %299 : vector<1x8x128xf32> to vector<8x128xf32>
    %301 = vector.shape_cast %298 : vector<8x128xf32> to vector<1x8x128xf32>
    tpu.vector_store %arg5[%c1, %c0_26, %c0_27], %301 {strides = array<i32>} : memref<2x8x128xf32, #tpu.memory_space<vmem>>, vector<1x8x128xf32>,
    %c0_28 = arith.constant 0 : index
    %c0_29 = arith.constant 0 : index
    %c0_30 = arith.constant 0 : index
    %302 = vector.load %arg6[%c0_28, %c0_29, %c0_30] : memref<2x8x32xf32, #tpu.memory_space<vmem>>, vector<1x8x32xf32>
    %303 = vector.shape_cast %302 : vector<1x8x32xf32> to vector<8x32xf32>
    %304 = vector.shape_cast %279 : vector<8x32xf32> to vector<1x8x32xf32>
    tpu.vector_store %arg6[%c0_28, %c0_29, %c0_30], %304 {strides = array<i32>} : memref<2x8x32xf32, #tpu.memory_space<vmem>>, vector<1x8x32xf32>,
    %c1_31 = arith.constant 1 : index
    %c0_32 = arith.constant 0 : index
    %c0_33 = arith.constant 0 : index
    %305 = vector.load %arg6[%c1_31, %c0_32, %c0_33] : memref<2x8x32xf32, #tpu.memory_space<vmem>>, vector<1x8x32xf32>
    %306 = vector.shape_cast %305 : vector<1x8x32xf32> to vector<8x32xf32>
    %307 = vector.shape_cast %297 : vector<8x32xf32> to vector<1x8x32xf32>
    tpu.vector_store %arg6[%c1_31, %c0_32, %c0_33], %307 {strides = array<i32>} : memref<2x8x32xf32, #tpu.memory_space<vmem>>, vector<1x8x32xf32>,
    %c0_34 = arith.constant 0 : index
    %c0_35 = arith.constant 0 : index
    %c0_36 = arith.constant 0 : index
    %308 = vector.load %arg7[%c0_34, %c0_35, %c0_36] : memref<2x8x32xf32, #tpu.memory_space<vmem>>, vector<1x8x32xf32>
    %309 = vector.shape_cast %308 : vector<1x8x32xf32> to vector<8x32xf32>
    %310 = vector.shape_cast %277 : vector<8x32xf32> to vector<1x8x32xf32>
    tpu.vector_store %arg7[%c0_34, %c0_35, %c0_36], %310 {strides = array<i32>} : memref<2x8x32xf32, #tpu.memory_space<vmem>>, vector<1x8x32xf32>,
    %c1_37 = arith.constant 1 : index
    %c0_38 = arith.constant 0 : index
    %c0_39 = arith.constant 0 : index
    %311 = vector.load %arg7[%c1_37, %c0_38, %c0_39] : memref<2x8x32xf32, #tpu.memory_space<vmem>>, vector<1x8x32xf32>
    %312 = vector.shape_cast %311 : vector<1x8x32xf32> to vector<8x32xf32>
    %313 = vector.shape_cast %295 : vector<8x32xf32> to vector<1x8x32xf32>
    tpu.vector_store %arg7[%c1_37, %c0_38, %c0_39], %313 {strides = array<i32>} : memref<2x8x32xf32, #tpu.memory_space<vmem>>, vector<1x8x32xf32>,
    return
  }
}

</mosaic_0001>

<llo_original>
// kernel: tpu_custom_call.1
$region0: #{tpu_custom_call.1}
  #allocation0 [shape = 'u32[]', space=smem, size = 0x4, offset = 0x4, fixed_abs, tag = 'smem constant byte address 0x4 - core index']
  #allocation1 [shape = 'u32[144,128]{1,0:T(1,128)}', space=vmem, size = 0x12000, scoped, tag = 'internal scratch']
  %s0 = inlined_call_operand.hbm [shape: f32[64,128], index: 0, kind: input, shape index: {}]
  %s1 = inlined_call_operand.hbm [shape: f32[128,128], index: 1, kind: input, shape index: {}]
  %s2 = inlined_call_operand.vmem [shape: f32[1,128], index: 2, kind: input, shape index: {}]
  %s3 = inlined_call_operand.hbm [shape: f32[64,256], index: 3, kind: input, shape index: {}]
  %s4 = inlined_call_operand.vmem [shape: f32[1,128], index: 4, kind: input, shape index: {}]
  %s5 = inlined_call_operand.hbm [shape: f32[2,8,128], index: 5, kind: output, shape index: {0}]
  %s6 = inlined_call_operand.hbm [shape: f32[2,8,32], index: 6, kind: output, shape index: {1}]
  %s7 = inlined_call_operand.hbm [shape: f32[2,8,32], index: 7, kind: output, shape index: {2}]
  %8 = xla_tuple %s5, %s6, %s7
  %s9 = sld [smem:[#allocation0]]
  $region58: #{tpu_custom_call.1} parent=0
    _
  %s11 = ssub.s32 1, %s9
  %s12 = scalar_select 0, %s11, %s9
  $region1: #{tpu_custom_call.1} parent=0
    #allocation2 [shape = 'u8[32768]{0}', space=vmem, size = 0x8000, scoped, tag = 'input window, operand 0, single buffered']
    #allocation3 [shape = 's32[1]{0}', space=sflag, size = 0x4, scoped, tag = 'scoped memory for tpu_custom_call.1']
    #allocation4 [shape = 's32[1]{0}', space=sflag, size = 0x4, scoped, tag = 'scoped memory for tpu_custom_call.1']
    #allocation5 [shape = 'u8[65536]{0}', space=vmem, size = 0x10000, scoped, tag = 'input window, operand 1, single buffered']
    #allocation6 [shape = 's32[1]{0}', space=sflag, size = 0x4, scoped, tag = 'scoped memory for tpu_custom_call.1']
    #allocation7 [shape = 'u8[65536]{0}', space=vmem, size = 0x10000, scoped, tag = 'input window, operand 3, single buffered']
    #allocation8 [shape = 'u8[8192]{0}', space=vmem, size = 0x2000, scoped, tag = 'output window, operand 0, single buffered']
    #allocation9 [shape = 'u8[8192]{0}', space=vmem, size = 0x2000, scoped, tag = 'output window, operand 1, single buffered']
    #allocation10 [shape = 's32[1]{0}', space=sflag, size = 0x4, scoped, tag = 'scoped memory for tpu_custom_call.1']
    #allocation11 [shape = 'u8[8192]{0}', space=vmem, size = 0x2000, scoped, tag = 'output window, operand 2, single buffered']
    %13 = vsyncpa [#allocation3], 0
    %14 = vsyncpa [#allocation6], 0
    %15 = vsyncpa [#allocation4], 0
    %16 = vsyncpa [#allocation10], 0
    // Predicated region
    $region2: #{tpu_custom_call.1} parent=1 // pred_check
      _
    $region3: #{tpu_custom_call.1} parent=1 // pred_check_branch
      %18 = sbr.rel (0) target = $region5
    $region4: #{tpu_custom_call.1} parent=1 // pred_region
      %s20 = ssub.s32 1024, 1024
      %21 = vsyncadd [#allocation3], %s20
      %s22 = sshll.u32 [#allocation2], 4
      %s23 = int_to_ptr.vmem [resolvable:$true] %s22
      %28 = dma.hbm_to_vmem [thread:$0]  %s0, 1024, %s23, [#allocation3], 128, 128, 8
    $region5: #{tpu_custom_call.1} parent=1 // pred_fallthru
      _
    // Predicated region
    $region6: #{tpu_custom_call.1} parent=1 // pred_check
      _
    $region7: #{tpu_custom_call.1} parent=1 // pred_check_branch
      %30 = sbr.rel (0) target = $region9
    $region8: #{tpu_custom_call.1} parent=1 // pred_region
      %s32 = ssub.s32 2048, 2048
      %33 = vsyncadd [#allocation6], %s32
      %s34 = sshll.u32 [#allocation5], 4
      %s35 = int_to_ptr.vmem [resolvable:$true] %s34
      %40 = dma.hbm_to_vmem [thread:$0]  %s1, 2048, %s35, [#allocation6], 128, 128, 8
    $region9: #{tpu_custom_call.1} parent=1 // pred_fallthru
      _
    // Predicated region
    $region10: #{tpu_custom_call.1} parent=1 // pred_check
      _
    $region11: #{tpu_custom_call.1} parent=1 // pred_check_branch
      %42 = sbr.rel (0) target = $region13
    $region12: #{tpu_custom_call.1} parent=1 // pred_region
      _
    $region13: #{tpu_custom_call.1} parent=1 // pred_fallthru
      _
    // Predicated region
    $region14: #{tpu_custom_call.1} parent=1 // pred_check
      _
    $region15: #{tpu_custom_call.1} parent=1 // pred_check_branch
      %44 = sbr.rel (0) target = $region17
    $region16: #{tpu_custom_call.1} parent=1 // pred_region
      %s46 = ssub.s32 2048, 2048
      %47 = vsyncadd [#allocation6], %s46
      %s48 = sshll.u32 [#allocation7], 4
      %s49 = int_to_ptr.vmem [resolvable:$true] %s48
      %54 = dma.hbm_to_vmem [thread:$0]  %s3, 2048, %s49, [#allocation6], 256, 256, 16
    $region17: #{tpu_custom_call.1} parent=1 // pred_fallthru
      _
    // Predicated region
    $region18: #{tpu_custom_call.1} parent=1 // pred_check
      _
    $region19: #{tpu_custom_call.1} parent=1 // pred_check_branch
      %56 = sbr.rel (0) target = $region21
    $region20: #{tpu_custom_call.1} parent=1 // pred_region
      _
    $region21: #{tpu_custom_call.1} parent=1 // pred_fallthru
      _
    // Predicated region
    $region22: #{tpu_custom_call.1} parent=1 // pred_check
      _
    $region23: #{tpu_custom_call.1} parent=1 // pred_check_branch
      %58 = sbr.rel (0) target = $region25
    $region24: #{tpu_custom_call.1} parent=1 // pred_region
      %59 = dma.done [#allocation3], 1024
    $region25: #{tpu_custom_call.1} parent=1 // pred_fallthru
      _
    // Predicated region
    $region26: #{tpu_custom_call.1} parent=1 // pred_check
      _
    $region27: #{tpu_custom_call.1} parent=1 // pred_check_branch
      %61 = sbr.rel (0) target = $region29
    $region28: #{tpu_custom_call.1} parent=1 // pred_region
      %62 = dma.done [#allocation6], 2048
    $region29: #{tpu_custom_call.1} parent=1 // pred_fallthru
      _
    // Predicated region
    $region30: #{tpu_custom_call.1} parent=1 // pred_check
      _
    $region31: #{tpu_custom_call.1} parent=1 // pred_check_branch
      %64 = sbr.rel (0) target = $region33
    $region32: #{tpu_custom_call.1} parent=1 // pred_region
      %65 = dma.done [#allocation6], 2048
    $region33: #{tpu_custom_call.1} parent=1 // pred_fallthru
      _
    %v66 = vlaneseq
    %v67 = vand.u32 %v66, 127
    %vm68 = vcmp.ge.s32.totalorder %v67, 64
    %vm69 = vcmp.lt.s32.totalorder %v67, 96
    %vm70 = vmand %vm68, %vm69
    %v71 = vsel %vm70, 1.0, 0.5
    %v72 = vsel %vm70, 0.0, 0.5
    %v73 = vld [vmem:[#allocation2] sm:$0xff]
    %v74 = vld [vmem:[#allocation2 + $0x8] sm:$0xff]
    %v75 = vld [vmem:[#allocation2 + $0x10] sm:$0xff]
    %v76 = vld [vmem:[#allocation2 + $0x18] sm:$0xff]
    %v77 = vld [vmem:[#allocation2 + $0x20] sm:$0xff]
    %v78 = vld [vmem:[#allocation2 + $0x28] sm:$0xff]
    %v79 = vld [vmem:[#allocation2 + $0x30] sm:$0xff]
    %v80 = vld [vmem:[#allocation2 + $0x38] sm:$0xff]
    %v81 = vld [vmem:[#allocation5] sm:$0xff]
    %v82 = vld [vmem:[#allocation5 + $0x8] sm:$0xff]
    %v83 = vld [vmem:[#allocation5 + $0x10] sm:$0xff]
    %v84 = vld [vmem:[#allocation5 + $0x18] sm:$0xff]
    %v85 = vld [vmem:[#allocation5 + $0x20] sm:$0xff]
    %v86 = vld [vmem:[#allocation5 + $0x28] sm:$0xff]
    %v87 = vld [vmem:[#allocation5 + $0x30] sm:$0xff]
    %v88 = vld [vmem:[#allocation5 + $0x38] sm:$0xff]
    %v89 = vld [vmem:[#allocation5 + $0x40] sm:$0xff]
    %v90 = vld [vmem:[#allocation5 + $0x48] sm:$0xff]
    %v91 = vld [vmem:[#allocation5 + $0x50] sm:$0xff]
    %v92 = vld [vmem:[#allocation5 + $0x58] sm:$0xff]
    %v93 = vld [vmem:[#allocation5 + $0x60] sm:$0xff]
    %v94 = vld [vmem:[#allocation5 + $0x68] sm:$0xff]
    %v95 = vld [vmem:[#allocation5 + $0x70] sm:$0xff]
    %v96 = vld [vmem:[#allocation5 + $0x78] sm:$0xff]
    %v97 = vld [vmem:[%s2] sm:$0x1]
    %v99 = vlaneseq
    %v100 = vshrl.u32 %v99, 7
    %v101 = vsub.s32 0, %v100
    %v102 = vrot.slane %v97, %v101
    %104 = vmatprep.subr.mxu0 0.0
    %105 = vmatpush1.msra.mxu0 %v81
    %106 = vmatprep.subr.mxu0 0.0
    %107 = vmatpush1.msra.mxu0 %v82
    %108 = vmatprep.subr.mxu0 0.0
    %109 = vmatpush1.msra.mxu0 %v83
    %110 = vmatprep.subr.mxu0 0.0
    %111 = vmatpush1.msra.mxu0 %v84
    %112 = vmatprep.subr.mxu0 0.0
    %113 = vmatpush1.msra.mxu0 %v85
    %114 = vmatprep.subr.mxu0 0.0
    %115 = vmatpush1.msra.mxu0 %v86
    %116 = vmatprep.subr.mxu0 0.0
    %117 = vmatpush1.msra.mxu0 %v87
    %118 = vmatprep.subr.mxu0 0.0
    %119 = vmatpush1.msra.mxu0 %v88
    %120 = vmatprep.subr.mxu0 0.0
    %121 = vmatpush1.msra.mxu0 %v89
    %122 = vmatprep.subr.mxu0 0.0
    %123 = vmatpush1.msra.mxu0 %v90
    %124 = vmatprep.subr.mxu0 0.0
    %125 = vmatpush1.msra.mxu0 %v91
    %126 = vmatprep.subr.mxu0 0.0
    %127 = vmatpush1.msra.mxu0 %v92
    %128 = vmatprep.subr.mxu0 0.0
    %129 = vmatpush1.msra.mxu0 %v93
    %130 = vmatprep.subr.mxu0 0.0
    %131 = vmatpush1.msra.mxu0 %v94
    %132 = vmatprep.subr.mxu0 0.0
    %133 = vmatpush1.msra.mxu0 %v95
    %134 = vmatprep.subr.mxu0 0.0
    %135 = vmatpush1.msra.mxu0 %v96
    %136 = vmatprep.subr.mxu0 0.0
    %137 = vmatpush1.msra.mxu0 0.0
    %138 = vmatprep.subr.mxu0 0.0
    %139 = vmatpush1.msra.mxu0 0.0
    %140 = vmatprep.subr.mxu0 0.0
    %141 = vmatpush1.msra.mxu0 0.0
    %142 = vmatprep.subr.mxu0 0.0
    %143 = vmatpush1.msra.mxu0 0.0
    %144 = vmatprep.subr.mxu0 0.0
    %145 = vmatpush1.msra.mxu0 0.0
    %146 = vmatprep.subr.mxu0 0.0
    %147 = vmatpush1.msra.mxu0 0.0
    %148 = vmatprep.subr.mxu0 0.0
    %149 = vmatpush1.msra.mxu0 0.0
    %150 = vmatprep.subr.mxu0 0.0
    %151 = vmatpush1.msra.mxu0 0.0
    %152 = vmatprep.subr.mxu0 0.0
    %153 = vmatpush1.msra.mxu0 0.0
    %154 = vmatprep.subr.mxu0 0.0
    %155 = vmatpush1.msra.mxu0 0.0
    %156 = vmatprep.subr.mxu0 0.0
    %157 = vmatpush1.msra.mxu0 0.0
    %158 = vmatprep.subr.mxu0 0.0
    %159 = vmatpush1.msra.mxu0 0.0
    %160 = vmatprep.subr.mxu0 0.0
    %161 = vmatpush1.msra.mxu0 0.0
    %162 = vmatprep.subr.mxu0 0.0
    %163 = vmatpush1.msra.mxu0 0.0
    %164 = vmatprep.subr.mxu0 0.0
    %165 = vmatpush1.msra.mxu0 0.0
    %166 = vmatprep.subr.mxu0 0.0
    %167 = vmatpush1.msra.mxu0 0.0
    %168 = vmatprep.mubr.f32.mxu0 0.0
    %169 = vmatmul.mubr.f32.gmra.mrb[0].mxu0 %v73
    %v170 = vpop.f32.mrb[0].mxu0
    %v171 = vadd.f32 %v102, %v170
    %v172 = vpop.f32.mrb[0].mxu0
    %173 = vmatprep.mubr.f32.mxu0 0.0
    %174 = vmatmul.mubr.f32.gmra.mrb[0].mxu0 %v74
    %v175 = vpop.f32.mrb[0].mxu0
    %v176 = vadd.f32 %v102, %v175
    %v177 = vpop.f32.mrb[0].mxu0
    %178 = vmatprep.mubr.f32.mxu0 0.0
    %179 = vmatmul.mubr.f32.gmra.mrb[0].mxu0 %v75
    %v180 = vpop.f32.mrb[0].mxu0
    %v181 = vadd.f32 %v102, %v180
    %v182 = vpop.f32.mrb[0].mxu0
    %183 = vmatprep.mubr.f32.mxu0 0.0
    %184 = vmatmul.mubr.f32.gmra.mrb[0].mxu0 %v76
    %v185 = vpop.f32.mrb[0].mxu0
    %v186 = vadd.f32 %v102, %v185
    %v187 = vpop.f32.mrb[0].mxu0
    %188 = vmatprep.mubr.f32.mxu0 0.0
    %189 = vmatmul.mubr.f32.gmra.mrb[0].mxu0 %v77
    %v190 = vpop.f32.mrb[0].mxu0
    %v191 = vadd.f32 %v102, %v190
    %v192 = vpop.f32.mrb[0].mxu0
    %193 = vmatprep.mubr.f32.mxu0 0.0
    %194 = vmatmul.mubr.f32.gmra.mrb[0].mxu0 %v78
    %v195 = vpop.f32.mrb[0].mxu0
    %v196 = vadd.f32 %v102, %v195
    %v197 = vpop.f32.mrb[0].mxu0
    %198 = vmatprep.mubr.f32.mxu0 0.0
    %199 = vmatmul.mubr.f32.gmra.mrb[0].mxu0 %v79
    %v200 = vpop.f32.mrb[0].mxu0
    %v201 = vadd.f32 %v102, %v200
    %v202 = vpop.f32.mrb[0].mxu0
    %203 = vmatprep.mubr.f32.mxu0 0.0
    %204 = vmatmul.mubr.f32.gmra.mrb[0].mxu0 %v80
    %v205 = vpop.f32.mrb[0].mxu0
    %v206 = vadd.f32 %v102, %v205
    %v207 = vpop.f32.mrb[0].mxu0
    %208 = vdwg.mxu0
    %v209 = vld [vmem:[#allocation7] sm:$0xff]
    %v210 = vld [vmem:[#allocation7 + $0x8] sm:$0xff]
    %v211 = vld [vmem:[#allocation7 + $0x10] sm:$0xff]
    %v212 = vld [vmem:[#allocation7 + $0x18] sm:$0xff]
    %v213 = vld [vmem:[#allocation7 + $0x20] sm:$0xff]
    %v214 = vld [vmem:[#allocation7 + $0x28] sm:$0xff]
    %v215 = vld [vmem:[#allocation7 + $0x30] sm:$0xff]
    %v216 = vld [vmem:[#allocation7 + $0x38] sm:$0xff]
    %v217 = vld [vmem:[#allocation7 + $0x40] sm:$0xff]
    %v218 = vld [vmem:[#allocation7 + $0x48] sm:$0xff]
    %v219 = vld [vmem:[#allocation7 + $0x50] sm:$0xff]
    %v220 = vld [vmem:[#allocation7 + $0x58] sm:$0xff]
    %v221 = vld [vmem:[#allocation7 + $0x60] sm:$0xff]
    %v222 = vld [vmem:[#allocation7 + $0x68] sm:$0xff]
    %v223 = vld [vmem:[#allocation7 + $0x70] sm:$0xff]
    %v224 = vld [vmem:[#allocation7 + $0x78] sm:$0xff]
    %v225 = vld [vmem:[%s4] sm:$0x1]
    %v226 = vadd.f32 %v171, 0.0
    %v227 = vmul.f32 %v71, %v226
    %v228 = vtanh.pop %v227
    %v229 = vmul.f32 %v71, %v228
    %v230 = vadd.f32 %v229, %v72
    %v231 = vmul.f32 %v230, 0.0
    %233 = vrot.lane.b32.xlu0 %v230, 64
    %v234 = vpop.permute.xlu0 %233
    %v236 = vmul.f32 %v230, %v234
    %238 = vrot.lane.b32.xlu0 %v236, 32
    %v239 = vpop.permute.xlu0 %238
    %v241 = vadd.f32 %v231, %v239
    %v242 = vtanh.pop %v241
    %244 = vrot.lane.b32.xlu0 %v242, 64
    %v245 = vpop.permute.xlu0 %244
    %v247 = vmul.f32 %v230, %v245
    %249 = vrot.lane.b32.xlu0 %v247, 32
    %v250 = vpop.permute.xlu0 %249
    %vm252 = vcmask 261120
    %v253 = vsel %vm252, %v250, 0.0
    %vm254 = vcmask 523264
    %v256 = vsel %vm254, %v253, 0
    %258 = vmatprep.subr.mxu0 %v210
    %259 = vmatpush1.msra.mxu0 %v209
    %260 = vmatprep.subr.mxu0 %v212
    %261 = vmatpush1.msra.mxu0 %v211
    %262 = vmatprep.subr.mxu0 %v214
    %263 = vmatpush1.msra.mxu0 %v213
    %264 = vmatprep.subr.mxu0 %v216
    %265 = vmatpush1.msra.mxu0 %v215
    %266 = vmatprep.subr.mxu0 %v218
    %267 = vmatpush1.msra.mxu0 %v217
    %268 = vmatprep.subr.mxu0 %v220
    %269 = vmatpush1.msra.mxu0 %v219
    %270 = vmatprep.subr.mxu0 %v222
    %271 = vmatpush1.msra.mxu0 %v221
    %272 = vmatprep.subr.mxu0 %v224
    %273 = vmatpush1.msra.mxu0 %v223
    %274 = vmatprep.subr.mxu0 0.0
    %275 = vmatpush1.msra.mxu0 0.0
    %276 = vmatprep.subr.mxu0 0.0
    %277 = vmatpush1.msra.mxu0 0.0
    %278 = vmatprep.subr.mxu0 0.0
    %279 = vmatpush1.msra.mxu0 0.0
    %280 = vmatprep.subr.mxu0 0.0
    %281 = vmatpush1.msra.mxu0 0.0
    %282 = vmatprep.subr.mxu0 0.0
    %283 = vmatpush1.msra.mxu0 0.0
    %284 = vmatprep.subr.mxu0 0.0
    %285 = vmatpush1.msra.mxu0 0.0
    %286 = vmatprep.subr.mxu0 0.0
    %287 = vmatpush1.msra.mxu0 0.0
    %288 = vmatprep.subr.mxu0 0.0
    %289 = vmatpush1.msra.mxu0 0.0
    %290 = vmatprep.subr.mxu0 0.0
    %291 = vmatpush1.msra.mxu0 0.0
    %292 = vmatprep.subr.mxu0 0.0
    %293 = vmatpush1.msra.mxu0 0.0
    %294 = vmatprep.subr.mxu0 0.0
    %295 = vmatpush1.msra.mxu0 0.0
    %296 = vmatprep.subr.mxu0 0.0
    %297 = vmatpush1.msra.mxu0 0.0
    %298 = vmatprep.subr.mxu0 0.0
    %299 = vmatpush1.msra.mxu0 0.0
    %300 = vmatprep.subr.mxu0 0.0
    %301 = vmatpush1.msra.mxu0 0.0
    %302 = vmatprep.subr.mxu0 0.0
    %303 = vmatpush1.msra.mxu0 0.0
    %304 = vmatprep.subr.mxu0 0.0
    %305 = vmatpush1.msra.mxu0 0.0
    %306 = vmatprep.subr.mxu0 0.0
    %307 = vmatpush1.msra.mxu0 0.0
    %308 = vmatprep.subr.mxu0 0.0
    %309 = vmatpush1.msra.mxu0 0.0
    %310 = vmatprep.subr.mxu0 0.0
    %311 = vmatpush1.msra.mxu0 0.0
    %312 = vmatprep.subr.mxu0 0.0
    %313 = vmatpush1.msra.mxu0 0.0
    %314 = vmatprep.subr.mxu0 0.0
    %315 = vmatpush1.msra.mxu0 0.0
    %316 = vmatprep.subr.mxu0 0.0
    %317 = vmatpush1.msra.mxu0 0.0
    %318 = vmatprep.subr.mxu0 0.0
    %319 = vmatpush1.msra.mxu0 0.0
    %320 = vmatprep.subr.mxu0 0.0
    %321 = vmatpush1.msra.mxu0 0.0
    %322 = vmatprep.mubr.f32.mxu0 0.0
    %323 = vmatmul.mubr.f32.gmra.mrb[0].mxu0 %v256
    %v324 = vpop.f32.mrb[0].mxu0
    %v325 = vadd.f32 0.0, %v324
    %v326 = vpop.f32.mrb[0].mxu0
    %v327 = vadd.f32 0.0, %v326
    %328 = vdwg.mxu0
    %v330 = vlaneseq
    %v331 = vshrl.u32 %v330, 7
    %v332 = vsub.s32 0, %v331
    %v333 = vrot.slane %v225, %v332
    %v335 = vadd.f32 %v327, %v333
    %v336 = vmul.f32 %v71, %v335
    %v337 = vtanh.pop %v336
    %v338 = vmul.f32 %v71, %v337
    %v339 = vadd.f32 %v338, %v72
    %v340 = vmul.f32 %v339, 0.0
    %342 = vrot.lane.b32.xlu0 %v339, 64
    %v343 = vpop.permute.xlu0 %342
    %v345 = vmul.f32 %v339, %v343
    %347 = vrot.lane.b32.xlu0 %v345, 32
    %v348 = vpop.permute.xlu0 %347
    %v350 = vadd.f32 %v340, %v348
    %v351 = vtanh.pop %v350
    %353 = vrot.lane.b32.xlu0 %v351, 64
    %v354 = vpop.permute.xlu0 %353
    %v356 = vmul.f32 %v339, %v354
    %v357 = vadd.f32 %v176, %v325
    %v358 = vmul.f32 %v71, %v357
    %v359 = vtanh.pop %v358
    %v360 = vmul.f32 %v71, %v359
    %v361 = vadd.f32 %v360, %v72
    %v362 = vmul.f32 %v361, %v241
    %364 = vrot.lane.b32.xlu0 %v361, 64
    %v365 = vpop.permute.xlu0 %364
    %v367 = vmul.f32 %v361, %v365
    %369 = vrot.lane.b32.xlu0 %v367, 32
    %v370 = vpop.permute.xlu0 %369
    %v372 = vadd.f32 %v362, %v370
    %v373 = vtanh.pop %v372
    %375 = vrot.lane.b32.xlu0 %v373, 64
    %v376 = vpop.permute.xlu0 %375
    %v378 = vmul.f32 %v361, %v376
    %380 = vrot.lane.b32.xlu0 %v378, 32
    %v381 = vpop.permute.xlu0 %380
    %384 = vrot.lane.b32.xlu0 %v356, 64
    %v385 = vpop.permute.xlu0 %384
    %v387 = vsel %vm252, %v381, %v385
    %v389 = vsel %vm254, %v387, 0
    %391 = vmatprep.subr.mxu0 %v210
    %392 = vmatpush1.msra.mxu0 %v209
    %393 = vmatprep.subr.mxu0 %v212
    %394 = vmatpush1.msra.mxu0 %v211
    %395 = vmatprep.subr.mxu0 %v214
    %396 = vmatpush1.msra.mxu0 %v213
    %397 = vmatprep.subr.mxu0 %v216
    %398 = vmatpush1.msra.mxu0 %v215
    %399 = vmatprep.subr.mxu0 %v218
    %400 = vmatpush1.msra.mxu0 %v217
    %401 = vmatprep.subr.mxu0 %v220
    %402 = vmatpush1.msra.mxu0 %v219
    %403 = vmatprep.subr.mxu0 %v222
    %404 = vmatpush1.msra.mxu0 %v221
    %405 = vmatprep.subr.mxu0 %v224
    %406 = vmatpush1.msra.mxu0 %v223
    %407 = vmatprep.subr.mxu0 0.0
    %408 = vmatpush1.msra.mxu0 0.0
    %409 = vmatprep.subr.mxu0 0.0
    %410 = vmatpush1.msra.mxu0 0.0
    %411 = vmatprep.subr.mxu0 0.0
    %412 = vmatpush1.msra.mxu0 0.0
    %413 = vmatprep.subr.mxu0 0.0
    %414 = vmatpush1.msra.mxu0 0.0
    %415 = vmatprep.subr.mxu0 0.0
    %416 = vmatpush1.msra.mxu0 0.0
    %417 = vmatprep.subr.mxu0 0.0
    %418 = vmatpush1.msra.mxu0 0.0
    %419 = vmatprep.subr.mxu0 0.0
    %420 = vmatpush1.msra.mxu0 0.0
    %421 = vmatprep.subr.mxu0 0.0
    %422 = vmatpush1.msra.mxu0 0.0
    %423 = vmatprep.subr.mxu0 0.0
    %424 = vmatpush1.msra.mxu0 0.0
    %425 = vmatprep.subr.mxu0 0.0
    %426 = vmatpush1.msra.mxu0 0.0
    %427 = vmatprep.subr.mxu0 0.0
    %428 = vmatpush1.msra.mxu0 0.0
    %429 = vmatprep.subr.mxu0 0.0
    %430 = vmatpush1.msra.mxu0 0.0
    %431 = vmatprep.subr.mxu0 0.0
    %432 = vmatpush1.msra.mxu0 0.0
    %433 = vmatprep.subr.mxu0 0.0
    %434 = vmatpush1.msra.mxu0 0.0
    %435 = vmatprep.subr.mxu0 0.0
    %436 = vmatpush1.msra.mxu0 0.0
    %437 = vmatprep.subr.mxu0 0.0
    %438 = vmatpush1.msra.mxu0 0.0
    %439 = vmatprep.subr.mxu0 0.0
    %440 = vmatpush1.msra.mxu0 0.0
    %441 = vmatprep.subr.mxu0 0.0
    %442 = vmatpush1.msra.mxu0 0.0
    %443 = vmatprep.subr.mxu0 0.0
    %444 = vmatpush1.msra.mxu0 0.0
    %445 = vmatprep.subr.mxu0 0.0
    %446 = vmatpush1.msra.mxu0 0.0
    %447 = vmatprep.subr.mxu0 0.0
    %448 = vmatpush1.msra.mxu0 0.0
    %449 = vmatprep.subr.mxu0 0.0
    %450 = vmatpush1.msra.mxu0 0.0
    %451 = vmatprep.subr.mxu0 0.0
    %452 = vmatpush1.msra.mxu0 0.0
    %453 = vmatprep.subr.mxu0 0.0
    %454 = vmatpush1.msra.mxu0 0.0
    %455 = vmatprep.mubr.f32.mxu0 0.0
    %456 = vmatmul.mubr.f32.gmra.mrb[0].mxu0 %v389
    %v457 = vpop.f32.mrb[0].mxu0
    %v458 = vadd.f32 0.0, %v457
    %v459 = vpop.f32.mrb[0].mxu0
    %v460 = vadd.f32 0.0, %v459
    %461 = vdwg.mxu0
    %v462 = vadd.f32 %v460, %v333
    %v463 = vmul.f32 %v71, %v462
    %v464 = vtanh.pop %v463
    %v465 = vmul.f32 %v71, %v464
    %v466 = vadd.f32 %v465, %v72
    %v467 = vmul.f32 %v466, %v350
    %469 = vrot.lane.b32.xlu0 %v466, 64
    %v470 = vpop.permute.xlu0 %469
    %v472 = vmul.f32 %v466, %v470
    %474 = vrot.lane.b32.xlu0 %v472, 32
    %v475 = vpop.permute.xlu0 %474
    %v477 = vadd.f32 %v467, %v475
    %v478 = vtanh.pop %v477
    %480 = vrot.lane.b32.xlu0 %v478, 64
    %v481 = vpop.permute.xlu0 %480
    %v483 = vmul.f32 %v466, %v481
    %v484 = vadd.f32 %v181, %v458
    %v485 = vmul.f32 %v71, %v484
    %v486 = vtanh.pop %v485
    %v487 = vmul.f32 %v71, %v486
    %v488 = vadd.f32 %v487, %v72
    %v489 = vmul.f32 %v488, %v372
    %491 = vrot.lane.b32.xlu0 %v488, 64
    %v492 = vpop.permute.xlu0 %491
    %v494 = vmul.f32 %v488, %v492
    %496 = vrot.lane.b32.xlu0 %v494, 32
    %v497 = vpop.permute.xlu0 %496
    %v499 = vadd.f32 %v489, %v497
    %v500 = vtanh.pop %v499
    %502 = vrot.lane.b32.xlu0 %v500, 64
    %v503 = vpop.permute.xlu0 %502
    %v505 = vmul.f32 %v488, %v503
    %507 = vrot.lane.b32.xlu0 %v505, 32
    %v508 = vpop.permute.xlu0 %507
    %511 = vrot.lane.b32.xlu0 %v483, 64
    %v512 = vpop.permute.xlu0 %511
    %v514 = vsel %vm252, %v508, %v512
    %v516 = vsel %vm254, %v514, 0
    %518 = vmatprep.subr.mxu0 %v210
    %519 = vmatpush1.msra.mxu0 %v209
    %520 = vmatprep.subr.mxu0 %v212
    %521 = vmatpush1.msra.mxu0 %v211
    %522 = vmatprep.subr.mxu0 %v214
    %523 = vmatpush1.msra.mxu0 %v213
    %524 = vmatprep.subr.mxu0 %v216
    %525 = vmatpush1.msra.mxu0 %v215
    %526 = vmatprep.subr.mxu0 %v218
    %527 = vmatpush1.msra.mxu0 %v217
    %528 = vmatprep.subr.mxu0 %v220
    %529 = vmatpush1.msra.mxu0 %v219
    %530 = vmatprep.subr.mxu0 %v222
    %531 = vmatpush1.msra.mxu0 %v221
    %532 = vmatprep.subr.mxu0 %v224
    %533 = vmatpush1.msra.mxu0 %v223
    %534 = vmatprep.subr.mxu0 0.0
    %535 = vmatpush1.msra.mxu0 0.0
    %536 = vmatprep.subr.mxu0 0.0
    %537 = vmatpush1.msra.mxu0 0.0
    %538 = vmatprep.subr.mxu0 0.0
    %539 = vmatpush1.msra.mxu0 0.0
    %540 = vmatprep.subr.mxu0 0.0
    %541 = vmatpush1.msra.mxu0 0.0
    %542 = vmatprep.subr.mxu0 0.0
    %543 = vmatpush1.msra.mxu0 0.0
    %544 = vmatprep.subr.mxu0 0.0
    %545 = vmatpush1.msra.mxu0 0.0
    %546 = vmatprep.subr.mxu0 0.0
    %547 = vmatpush1.msra.mxu0 0.0
    %548 = vmatprep.subr.mxu0 0.0
    %549 = vmatpush1.msra.mxu0 0.0
    %550 = vmatprep.subr.mxu0 0.0
    %551 = vmatpush1.msra.mxu0 0.0
    %552 = vmatprep.subr.mxu0 0.0
    %553 = vmatpush1.msra.mxu0 0.0
    %554 = vmatprep.subr.mxu0 0.0
    %555 = vmatpush1.msra.mxu0 0.0
    %556 = vmatprep.subr.mxu0 0.0
    %557 = vmatpush1.msra.mxu0 0.0
    %558 = vmatprep.subr.mxu0 0.0
    %559 = vmatpush1.msra.mxu0 0.0
    %560 = vmatprep.subr.mxu0 0.0
    %561 = vmatpush1.msra.mxu0 0.0
    %562 = vmatprep.subr.mxu0 0.0
    %563 = vmatpush1.msra.mxu0 0.0
    %564 = vmatprep.subr.mxu0 0.0
    %565 = vmatpush1.msra.mxu0 0.0
    %566 = vmatprep.subr.mxu0 0.0
    %567 = vmatpush1.msra.mxu0 0.0
    %568 = vmatprep.subr.mxu0 0.0
    %569 = vmatpush1.msra.mxu0 0.0
    %570 = vmatprep.subr.mxu0 0.0
    %571 = vmatpush1.msra.mxu0 0.0
    %572 = vmatprep.subr.mxu0 0.0
    %573 = vmatpush1.msra.mxu0 0.0
    %574 = vmatprep.subr.mxu0 0.0
    %575 = vmatpush1.msra.mxu0 0.0
    %576 = vmatprep.subr.mxu0 0.0
    %577 = vmatpush1.msra.mxu0 0.0
    %578 = vmatprep.subr.mxu0 0.0
    %579 = vmatpush1.msra.mxu0 0.0
    %580 = vmatprep.subr.mxu0 0.0
    %581 = vmatpush1.msra.mxu0 0.0
    %582 = vmatprep.mubr.f32.mxu0 0.0
    %583 = vmatmul.mubr.f32.gmra.mrb[0].mxu0 %v516
    %v584 = vpop.f32.mrb[0].mxu0
    %v585 = vadd.f32 0.0, %v584
    %v586 = vpop.f32.mrb[0].mxu0
    %v587 = vadd.f32 0.0, %v586
    %588 = vdwg.mxu0
    %v589 = vadd.f32 %v587, %v333
    %v590 = vmul.f32 %v71, %v589
    %v591 = vtanh.pop %v590
    %v592 = vmul.f32 %v71, %v591
    %v593 = vadd.f32 %v592, %v72
    %v594 = vmul.f32 %v593, %v477
    %596 = vrot.lane.b32.xlu0 %v593, 64
    %v597 = vpop.permute.xlu0 %596
    %v599 = vmul.f32 %v593, %v597
    %601 = vrot.lane.b32.xlu0 %v599, 32
    %v602 = vpop.permute.xlu0 %601
    %v604 = vadd.f32 %v594, %v602
    %v605 = vtanh.pop %v604
    %607 = vrot.lane.b32.xlu0 %v605, 64
    %v608 = vpop.permute.xlu0 %607
    %v610 = vmul.f32 %v593, %v608
    %v611 = vadd.f32 %v186, %v585
    %v612 = vmul.f32 %v71, %v611
    %v613 = vtanh.pop %v612
    %v614 = vmul.f32 %v71, %v613
    %v615 = vadd.f32 %v614, %v72
    %v616 = vmul.f32 %v615, %v499
    %618 = vrot.lane.b32.xlu0 %v615, 64
    %v619 = vpop.permute.xlu0 %618
    %v621 = vmul.f32 %v615, %v619
    %623 = vrot.lane.b32.xlu0 %v621, 32
    %v624 = vpop.permute.xlu0 %623
    %v626 = vadd.f32 %v616, %v624
    %v627 = vtanh.pop %v626
    %629 = vrot.lane.b32.xlu0 %v627, 64
    %v630 = vpop.permute.xlu0 %629
    %v632 = vmul.f32 %v615, %v630
    %634 = vrot.lane.b32.xlu0 %v632, 32
    %v635 = vpop.permute.xlu0 %634
    %638 = vrot.lane.b32.xlu0 %v610, 64
    %v639 = vpop.permute.xlu0 %638
    %v641 = vsel %vm252, %v635, %v639
    %v643 = vsel %vm254, %v641, 0
    %645 = vmatprep.subr.mxu0 %v210
    %646 = vmatpush1.msra.mxu0 %v209
    %647 = vmatprep.subr.mxu0 %v212
    %648 = vmatpush1.msra.mxu0 %v211
    %649 = vmatprep.subr.mxu0 %v214
    %650 = vmatpush1.msra.mxu0 %v213
    %651 = vmatprep.subr.mxu0 %v216
    %652 = vmatpush1.msra.mxu0 %v215
    %653 = vmatprep.subr.mxu0 %v218
    %654 = vmatpush1.msra.mxu0 %v217
    %655 = vmatprep.subr.mxu0 %v220
    %656 = vmatpush1.msra.mxu0 %v219
    %657 = vmatprep.subr.mxu0 %v222
    %658 = vmatpush1.msra.mxu0 %v221
    %659 = vmatprep.subr.mxu0 %v224
    %660 = vmatpush1.msra.mxu0 %v223
    %661 = vmatprep.subr.mxu0 0.0
    %662 = vmatpush1.msra.mxu0 0.0
    %663 = vmatprep.subr.mxu0 0.0
    %664 = vmatpush1.msra.mxu0 0.0
    %665 = vmatprep.subr.mxu0 0.0
    %666 = vmatpush1.msra.mxu0 0.0
    %667 = vmatprep.subr.mxu0 0.0
    %668 = vmatpush1.msra.mxu0 0.0
    %669 = vmatprep.subr.mxu0 0.0
    %670 = vmatpush1.msra.mxu0 0.0
    %671 = vmatprep.subr.mxu0 0.0
    %672 = vmatpush1.msra.mxu0 0.0
    %673 = vmatprep.subr.mxu0 0.0
    %674 = vmatpush1.msra.mxu0 0.0
    %675 = vmatprep.subr.mxu0 0.0
    %676 = vmatpush1.msra.mxu0 0.0
    %677 = vmatprep.subr.mxu0 0.0
    %678 = vmatpush1.msra.mxu0 0.0
    %679 = vmatprep.subr.mxu0 0.0
    %680 = vmatpush1.msra.mxu0 0.0
    %681 = vmatprep.subr.mxu0 0.0
    %682 = vmatpush1.msra.mxu0 0.0
    %683 = vmatprep.subr.mxu0 0.0
    %684 = vmatpush1.msra.mxu0 0.0
    %685 = vmatprep.subr.mxu0 0.0
    %686 = vmatpush1.msra.mxu0 0.0
    %687 = vmatprep.subr.mxu0 0.0
    %688 = vmatpush1.msra.mxu0 0.0
    %689 = vmatprep.subr.mxu0 0.0
    %690 = vmatpush1.msra.mxu0 0.0
    %691 = vmatprep.subr.mxu0 0.0
    %692 = vmatpush1.msra.mxu0 0.0
    %693 = vmatprep.subr.mxu0 0.0
    %694 = vmatpush1.msra.mxu0 0.0
    %695 = vmatprep.subr.mxu0 0.0
    %696 = vmatpush1.msra.mxu0 0.0
    %697 = vmatprep.subr.mxu0 0.0
    %698 = vmatpush1.msra.mxu0 0.0
    %699 = vmatprep.subr.mxu0 0.0
    %700 = vmatpush1.msra.mxu0 0.0
    %701 = vmatprep.subr.mxu0 0.0
    %702 = vmatpush1.msra.mxu0 0.0
    %703 = vmatprep.subr.mxu0 0.0
    %704 = vmatpush1.msra.mxu0 0.0
    %705 = vmatprep.subr.mxu0 0.0
    %706 = vmatpush1.msra.mxu0 0.0
    %707 = vmatprep.subr.mxu0 0.0
    %708 = vmatpush1.msra.mxu0 0.0
    %709 = vmatprep.mubr.f32.mxu0 0.0
    %710 = vmatmul.mubr.f32.gmra.mrb[0].mxu0 %v643
    %v711 = vpop.f32.mrb[0].mxu0
    %v712 = vadd.f32 0.0, %v711
    %v713 = vpop.f32.mrb[0].mxu0
    %v714 = vadd.f32 0.0, %v713
    %715 = vdwg.mxu0
    %v716 = vadd.f32 %v714, %v333
    %v717 = vmul.f32 %v71, %v716
    %v718 = vtanh.pop %v717
    %v719 = vmul.f32 %v71, %v718
    %v720 = vadd.f32 %v719, %v72
    %v721 = vmul.f32 %v720, %v604
    %723 = vrot.lane.b32.xlu0 %v720, 64
    %v724 = vpop.permute.xlu0 %723
    %v726 = vmul.f32 %v720, %v724
    %728 = vrot.lane.b32.xlu0 %v726, 32
    %v729 = vpop.permute.xlu0 %728
    %v731 = vadd.f32 %v721, %v729
    %v732 = vtanh.pop %v731
    %734 = vrot.lane.b32.xlu0 %v732, 64
    %v735 = vpop.permute.xlu0 %734
    %v737 = vmul.f32 %v720, %v735
    %738 = vrot.lane.b32.xlu0 %v356, 32
    %v739 = vpop.permute.xlu0 %738
    %741 = vrot.lane.b32.xlu0 %v610, 96
    %v742 = vpop.permute.xlu0 %741
    %v744 = vsel %vm252, %v739, %v512
    %v745 = vsel %vm254, %v744, %v742
    %vm746 = vcmask 785408
    %v747 = vsel %vm746, %v745, %v737
    %748 = vst [vmem:[#allocation8] sm:$0xff] %v747
    %v749 = vadd.f32 %v191, %v712
    %v750 = vmul.f32 %v71, %v749
    %v751 = vtanh.pop %v750
    %v752 = vmul.f32 %v71, %v751
    %v753 = vadd.f32 %v752, %v72
    %v754 = vmul.f32 %v753, %v626
    %756 = vrot.lane.b32.xlu0 %v753, 64
    %v757 = vpop.permute.xlu0 %756
    %v759 = vmul.f32 %v753, %v757
    %761 = vrot.lane.b32.xlu0 %v759, 32
    %v762 = vpop.permute.xlu0 %761
    %v764 = vadd.f32 %v754, %v762
    %v765 = vtanh.pop %v764
    %767 = vrot.lane.b32.xlu0 %v765, 64
    %v768 = vpop.permute.xlu0 %767
    %v770 = vmul.f32 %v753, %v768
    %772 = vrot.lane.b32.xlu0 %v770, 32
    %v773 = vpop.permute.xlu0 %772
    %776 = vrot.lane.b32.xlu0 %v737, 64
    %v777 = vpop.permute.xlu0 %776
    %v779 = vsel %vm252, %v773, %v777
    %v781 = vsel %vm254, %v779, 0
    %783 = vmatprep.subr.mxu0 %v210
    %784 = vmatpush1.msra.mxu0 %v209
    %785 = vmatprep.subr.mxu0 %v212
    %786 = vmatpush1.msra.mxu0 %v211
    %787 = vmatprep.subr.mxu0 %v214
    %788 = vmatpush1.msra.mxu0 %v213
    %789 = vmatprep.subr.mxu0 %v216
    %790 = vmatpush1.msra.mxu0 %v215
    %791 = vmatprep.subr.mxu0 %v218
    %792 = vmatpush1.msra.mxu0 %v217
    %793 = vmatprep.subr.mxu0 %v220
    %794 = vmatpush1.msra.mxu0 %v219
    %795 = vmatprep.subr.mxu0 %v222
    %796 = vmatpush1.msra.mxu0 %v221
    %797 = vmatprep.subr.mxu0 %v224
    %798 = vmatpush1.msra.mxu0 %v223
    %799 = vmatprep.subr.mxu0 0.0
    %800 = vmatpush1.msra.mxu0 0.0
    %801 = vmatprep.subr.mxu0 0.0
    %802 = vmatpush1.msra.mxu0 0.0
    %803 = vmatprep.subr.mxu0 0.0
    %804 = vmatpush1.msra.mxu0 0.0
    %805 = vmatprep.subr.mxu0 0.0
    %806 = vmatpush1.msra.mxu0 0.0
    %807 = vmatprep.subr.mxu0 0.0
    %808 = vmatpush1.msra.mxu0 0.0
    %809 = vmatprep.subr.mxu0 0.0
    %810 = vmatpush1.msra.mxu0 0.0
    %811 = vmatprep.subr.mxu0 0.0
    %812 = vmatpush1.msra.mxu0 0.0
    %813 = vmatprep.subr.mxu0 0.0
    %814 = vmatpush1.msra.mxu0 0.0
    %815 = vmatprep.subr.mxu0 0.0
    %816 = vmatpush1.msra.mxu0 0.0
    %817 = vmatprep.subr.mxu0 0.0
    %818 = vmatpush1.msra.mxu0 0.0
    %819 = vmatprep.subr.mxu0 0.0
    %820 = vmatpush1.msra.mxu0 0.0
    %821 = vmatprep.subr.mxu0 0.0
    %822 = vmatpush1.msra.mxu0 0.0
    %823 = vmatprep.subr.mxu0 0.0
    %824 = vmatpush1.msra.mxu0 0.0
    %825 = vmatprep.subr.mxu0 0.0
    %826 = vmatpush1.msra.mxu0 0.0
    %827 = vmatprep.subr.mxu0 0.0
    %828 = vmatpush1.msra.mxu0 0.0
    %829 = vmatprep.subr.mxu0 0.0
    %830 = vmatpush1.msra.mxu0 0.0
    %831 = vmatprep.subr.mxu0 0.0
    %832 = vmatpush1.msra.mxu0 0.0
    %833 = vmatprep.subr.mxu0 0.0
    %834 = vmatpush1.msra.mxu0 0.0
    %835 = vmatprep.subr.mxu0 0.0
    %836 = vmatpush1.msra.mxu0 0.0
    %837 = vmatprep.subr.mxu0 0.0
    %838 = vmatpush1.msra.mxu0 0.0
    %839 = vmatprep.subr.mxu0 0.0
    %840 = vmatpush1.msra.mxu0 0.0
    %841 = vmatprep.subr.mxu0 0.0
    %842 = vmatpush1.msra.mxu0 0.0
    %843 = vmatprep.subr.mxu0 0.0
    %844 = vmatpush1.msra.mxu0 0.0
    %845 = vmatprep.subr.mxu0 0.0
    %846 = vmatpush1.msra.mxu0 0.0
    %847 = vmatprep.mubr.f32.mxu0 0.0
    %848 = vmatmul.mubr.f32.gmra.mrb[0].mxu0 %v781
    %v849 = vpop.f32.mrb[0].mxu0
    %v850 = vadd.f32 0.0, %v849
    %v851 = vpop.f32.mrb[0].mxu0
    %v852 = vadd.f32 0.0, %v851
    %853 = vdwg.mxu0
    %v854 = vadd.f32 %v852, %v333
    %v855 = vmul.f32 %v71, %v854
    %v856 = vtanh.pop %v855
    %v857 = vmul.f32 %v71, %v856
    %v858 = vadd.f32 %v857, %v72
    %v859 = vmul.f32 %v858, %v731
    %861 = vrot.lane.b32.xlu0 %v858, 64
    %v862 = vpop.permute.xlu0 %861
    %v864 = vmul.f32 %v858, %v862
    %866 = vrot.lane.b32.xlu0 %v864, 32
    %v867 = vpop.permute.xlu0 %866
    %v869 = vadd.f32 %v859, %v867
    %v870 = vtanh.pop %v869
    %872 = vrot.lane.b32.xlu0 %v870, 64
    %v873 = vpop.permute.xlu0 %872
    %v875 = vmul.f32 %v858, %v873
    %v876 = vadd.f32 %v196, %v850
    %v877 = vmul.f32 %v71, %v876
    %v878 = vtanh.pop %v877
    %v879 = vmul.f32 %v71, %v878
    %v880 = vadd.f32 %v879, %v72
    %v881 = vmul.f32 %v880, %v764
    %883 = vrot.lane.b32.xlu0 %v880, 64
    %v884 = vpop.permute.xlu0 %883
    %v886 = vmul.f32 %v880, %v884
    %888 = vrot.lane.b32.xlu0 %v886, 32
    %v889 = vpop.permute.xlu0 %888
    %v891 = vadd.f32 %v881, %v889
    %v892 = vtanh.pop %v891
    %894 = vrot.lane.b32.xlu0 %v892, 64
    %v895 = vpop.permute.xlu0 %894
    %v897 = vmul.f32 %v880, %v895
    %899 = vrot.lane.b32.xlu0 %v897, 32
    %v900 = vpop.permute.xlu0 %899
    %903 = vrot.lane.b32.xlu0 %v875, 64
    %v904 = vpop.permute.xlu0 %903
    %v906 = vsel %vm252, %v900, %v904
    %v908 = vsel %vm254, %v906, 0
    %910 = vmatprep.subr.mxu0 %v210
    %911 = vmatpush1.msra.mxu0 %v209
    %912 = vmatprep.subr.mxu0 %v212
    %913 = vmatpush1.msra.mxu0 %v211
    %914 = vmatprep.subr.mxu0 %v214
    %915 = vmatpush1.msra.mxu0 %v213
    %916 = vmatprep.subr.mxu0 %v216
    %917 = vmatpush1.msra.mxu0 %v215
    %918 = vmatprep.subr.mxu0 %v218
    %919 = vmatpush1.msra.mxu0 %v217
    %920 = vmatprep.subr.mxu0 %v220
    %921 = vmatpush1.msra.mxu0 %v219
    %922 = vmatprep.subr.mxu0 %v222
    %923 = vmatpush1.msra.mxu0 %v221
    %924 = vmatprep.subr.mxu0 %v224
    %925 = vmatpush1.msra.mxu0 %v223
    %926 = vmatprep.subr.mxu0 0.0
    %927 = vmatpush1.msra.mxu0 0.0
    %928 = vmatprep.subr.mxu0 0.0
    %929 = vmatpush1.msra.mxu0 0.0
    %930 = vmatprep.subr.mxu0 0.0
    %931 = vmatpush1.msra.mxu0 0.0
    %932 = vmatprep.subr.mxu0 0.0
    %933 = vmatpush1.msra.mxu0 0.0
    %934 = vmatprep.subr.mxu0 0.0
    %935 = vmatpush1.msra.mxu0 0.0
    %936 = vmatprep.subr.mxu0 0.0
    %937 = vmatpush1.msra.mxu0 0.0
    %938 = vmatprep.subr.mxu0 0.0
    %939 = vmatpush1.msra.mxu0 0.0
    %940 = vmatprep.subr.mxu0 0.0
    %941 = vmatpush1.msra.mxu0 0.0
    %942 = vmatprep.subr.mxu0 0.0
    %943 = vmatpush1.msra.mxu0 0.0
    %944 = vmatprep.subr.mxu0 0.0
    %945 = vmatpush1.msra.mxu0 0.0
    %946 = vmatprep.subr.mxu0 0.0
    %947 = vmatpush1.msra.mxu0 0.0
    %948 = vmatprep.subr.mxu0 0.0
    %949 = vmatpush1.msra.mxu0 0.0
    %950 = vmatprep.subr.mxu0 0.0
    %951 = vmatpush1.msra.mxu0 0.0
    %952 = vmatprep.subr.mxu0 0.0
    %953 = vmatpush1.msra.mxu0 0.0
    %954 = vmatprep.subr.mxu0 0.0
    %955 = vmatpush1.msra.mxu0 0.0
    %956 = vmatprep.subr.mxu0 0.0
    %957 = vmatpush1.msra.mxu0 0.0
    %958 = vmatprep.subr.mxu0 0.0
    %959 = vmatpush1.msra.mxu0 0.0
    %960 = vmatprep.subr.mxu0 0.0
    %961 = vmatpush1.msra.mxu0 0.0
    %962 = vmatprep.subr.mxu0 0.0
    %963 = vmatpush1.msra.mxu0 0.0
    %964 = vmatprep.subr.mxu0 0.0
    %965 = vmatpush1.msra.mxu0 0.0
    %966 = vmatprep.subr.mxu0 0.0
    %967 = vmatpush1.msra.mxu0 0.0
    %968 = vmatprep.subr.mxu0 0.0
    %969 = vmatpush1.msra.mxu0 0.0
    %970 = vmatprep.subr.mxu0 0.0
    %971 = vmatpush1.msra.mxu0 0.0
    %972 = vmatprep.subr.mxu0 0.0
    %973 = vmatpush1.msra.mxu0 0.0
    %974 = vmatprep.mubr.f32.mxu0 0.0
    %975 = vmatmul.mubr.f32.gmra.mrb[0].mxu0 %v908
    %v976 = vpop.f32.mrb[0].mxu0
    %v977 = vadd.f32 0.0, %v976
    %v978 = vpop.f32.mrb[0].mxu0
    %v979 = vadd.f32 0.0, %v978
    %980 = vdwg.mxu0
    %v981 = vadd.f32 %v979, %v333
    %v982 = vmul.f32 %v71, %v981
    %v983 = vtanh.pop %v982
    %v984 = vmul.f32 %v71, %v983
    %v985 = vadd.f32 %v984, %v72
    %v986 = vmul.f32 %v985, %v869
    %988 = vrot.lane.b32.xlu0 %v985, 64
    %v989 = vpop.permute.xlu0 %988
    %v991 = vmul.f32 %v985, %v989
    %993 = vrot.lane.b32.xlu0 %v991, 32
    %v994 = vpop.permute.xlu0 %993
    %v996 = vadd.f32 %v986, %v994
    %v997 = vtanh.pop %v996
    %999 = vrot.lane.b32.xlu0 %v997, 64
    %v1000 = vpop.permute.xlu0 %999
    %v1002 = vmul.f32 %v985, %v1000
    %v1003 = vadd.f32 %v201, %v977
    %v1004 = vmul.f32 %v71, %v1003
    %v1005 = vtanh.pop %v1004
    %v1006 = vmul.f32 %v71, %v1005
    %v1007 = vadd.f32 %v1006, %v72
    %v1008 = vmul.f32 %v1007, %v891
    %1010 = vrot.lane.b32.xlu0 %v1007, 64
    %v1011 = vpop.permute.xlu0 %1010
    %v1013 = vmul.f32 %v1007, %v1011
    %1015 = vrot.lane.b32.xlu0 %v1013, 32
    %v1016 = vpop.permute.xlu0 %1015
    %v1018 = vadd.f32 %v1008, %v1016
    %v1019 = vtanh.pop %v1018
    %1021 = vrot.lane.b32.xlu0 %v1019, 64
    %v1022 = vpop.permute.xlu0 %1021
    %v1024 = vmul.f32 %v1007, %v1022
    %1026 = vrot.lane.b32.xlu0 %v1024, 32
    %v1027 = vpop.permute.xlu0 %1026
    %1030 = vrot.lane.b32.xlu0 %v1002, 64
    %v1031 = vpop.permute.xlu0 %1030
    %v1033 = vsel %vm252, %v1027, %v1031
    %v1035 = vsel %vm254, %v1033, 0
    %1037 = vmatprep.subr.mxu0 %v210
    %1038 = vmatpush1.msra.mxu0 %v209
    %1039 = vmatprep.subr.mxu0 %v212
    %1040 = vmatpush1.msra.mxu0 %v211
    %1041 = vmatprep.subr.mxu0 %v214
    %1042 = vmatpush1.msra.mxu0 %v213
    %1043 = vmatprep.subr.mxu0 %v216
    %1044 = vmatpush1.msra.mxu0 %v215
    %1045 = vmatprep.subr.mxu0 %v218
    %1046 = vmatpush1.msra.mxu0 %v217
    %1047 = vmatprep.subr.mxu0 %v220
    %1048 = vmatpush1.msra.mxu0 %v219
    %1049 = vmatprep.subr.mxu0 %v222
    %1050 = vmatpush1.msra.mxu0 %v221
    %1051 = vmatprep.subr.mxu0 %v224
    %1052 = vmatpush1.msra.mxu0 %v223
    %1053 = vmatprep.subr.mxu0 0.0
    %1054 = vmatpush1.msra.mxu0 0.0
    %1055 = vmatprep.subr.mxu0 0.0
    %1056 = vmatpush1.msra.mxu0 0.0
    %1057 = vmatprep.subr.mxu0 0.0
    %1058 = vmatpush1.msra.mxu0 0.0
    %1059 = vmatprep.subr.mxu0 0.0
    %1060 = vmatpush1.msra.mxu0 0.0
    %1061 = vmatprep.subr.mxu0 0.0
    %1062 = vmatpush1.msra.mxu0 0.0
    %1063 = vmatprep.subr.mxu0 0.0
    %1064 = vmatpush1.msra.mxu0 0.0
    %1065 = vmatprep.subr.mxu0 0.0
    %1066 = vmatpush1.msra.mxu0 0.0
    %1067 = vmatprep.subr.mxu0 0.0
    %1068 = vmatpush1.msra.mxu0 0.0
    %1069 = vmatprep.subr.mxu0 0.0
    %1070 = vmatpush1.msra.mxu0 0.0
    %1071 = vmatprep.subr.mxu0 0.0
    %1072 = vmatpush1.msra.mxu0 0.0
    %1073 = vmatprep.subr.mxu0 0.0
    %1074 = vmatpush1.msra.mxu0 0.0
    %1075 = vmatprep.subr.mxu0 0.0
    %1076 = vmatpush1.msra.mxu0 0.0
    %1077 = vmatprep.subr.mxu0 0.0
    %1078 = vmatpush1.msra.mxu0 0.0
    %1079 = vmatprep.subr.mxu0 0.0
    %1080 = vmatpush1.msra.mxu0 0.0
    %1081 = vmatprep.subr.mxu0 0.0
    %1082 = vmatpush1.msra.mxu0 0.0
    %1083 = vmatprep.subr.mxu0 0.0
    %1084 = vmatpush1.msra.mxu0 0.0
    %1085 = vmatprep.subr.mxu0 0.0
    %1086 = vmatpush1.msra.mxu0 0.0
    %1087 = vmatprep.subr.mxu0 0.0
    %1088 = vmatpush1.msra.mxu0 0.0
    %1089 = vmatprep.subr.mxu0 0.0
    %1090 = vmatpush1.msra.mxu0 0.0
    %1091 = vmatprep.subr.mxu0 0.0
    %1092 = vmatpush1.msra.mxu0 0.0
    %1093 = vmatprep.subr.mxu0 0.0
    %1094 = vmatpush1.msra.mxu0 0.0
    %1095 = vmatprep.subr.mxu0 0.0
    %1096 = vmatpush1.msra.mxu0 0.0
    %1097 = vmatprep.subr.mxu0 0.0
    %1098 = vmatpush1.msra.mxu0 0.0
    %1099 = vmatprep.subr.mxu0 0.0
    %1100 = vmatpush1.msra.mxu0 0.0
    %1101 = vmatprep.mubr.f32.mxu0 0.0
    %1102 = vmatmul.mubr.f32.gmra.mrb[0].mxu0 %v1035
    %v1103 = vpop.f32.mrb[0].mxu0
    %v1104 = vadd.f32 0.0, %v1103
    %v1105 = vpop.f32.mrb[0].mxu0
    %v1106 = vadd.f32 0.0, %v1105
    %1107 = vdwg.mxu0
    %v1108 = vadd.f32 %v1106, %v333
    %v1109 = vmul.f32 %v71, %v1108
    %v1110 = vtanh.pop %v1109
    %v1111 = vmul.f32 %v71, %v1110
    %v1112 = vadd.f32 %v1111, %v72
    %v1113 = vmul.f32 %v1112, %v996
    %1115 = vrot.lane.b32.xlu0 %v1112, 64
    %v1116 = vpop.permute.xlu0 %1115
    %v1118 = vmul.f32 %v1112, %v1116
    %1120 = vrot.lane.b32.xlu0 %v1118, 32
    %v1121 = vpop.permute.xlu0 %1120
    %v1123 = vadd.f32 %v1113, %v1121
    %v1124 = vtanh.pop %v1123
    %1126 = vrot.lane.b32.xlu0 %v1124, 64
    %v1127 = vpop.permute.xlu0 %1126
    %v1129 = vmul.f32 %v1112, %v1127
    %v1130 = vadd.f32 %v206, %v1104
    %v1131 = vmul.f32 %v71, %v1130
    %v1132 = vtanh.pop %v1131
    %v1133 = vmul.f32 %v71, %v1132
    %v1134 = vadd.f32 %v1133, %v72
    %v1135 = vmul.f32 %v1134, %v1018
    %1137 = vrot.lane.b32.xlu0 %v1134, 64
    %v1138 = vpop.permute.xlu0 %1137
    %v1140 = vmul.f32 %v1134, %v1138
    %1142 = vrot.lane.b32.xlu0 %v1140, 32
    %v1143 = vpop.permute.xlu0 %1142
    %v1145 = vadd.f32 %v1135, %v1143
    %v1146 = vtanh.pop %v1145
    %1148 = vrot.lane.b32.xlu0 %v1146, 64
    %v1149 = vpop.permute.xlu0 %1148
    %v1151 = vmul.f32 %v1134, %v1149
    %1153 = vrot.lane.b32.xlu0 %v1151, 32
    %v1154 = vpop.permute.xlu0 %1153
    %1157 = vrot.lane.b32.xlu0 %v1129, 64
    %v1158 = vpop.permute.xlu0 %1157
    %v1160 = vsel %vm252, %v1154, %v1158
    %v1162 = vsel %vm254, %v1160, 0
    %1164 = vmatprep.subr.mxu0 %v210
    %1165 = vmatpush1.msra.mxu0 %v209
    %1166 = vmatprep.subr.mxu0 %v212
    %1167 = vmatpush1.msra.mxu0 %v211
    %1168 = vmatprep.subr.mxu0 %v214
    %1169 = vmatpush1.msra.mxu0 %v213
    %1170 = vmatprep.subr.mxu0 %v216
    %1171 = vmatpush1.msra.mxu0 %v215
    %1172 = vmatprep.subr.mxu0 %v218
    %1173 = vmatpush1.msra.mxu0 %v217
    %1174 = vmatprep.subr.mxu0 %v220
    %1175 = vmatpush1.msra.mxu0 %v219
    %1176 = vmatprep.subr.mxu0 %v222
    %1177 = vmatpush1.msra.mxu0 %v221
    %1178 = vmatprep.subr.mxu0 %v224
    %1179 = vmatpush1.msra.mxu0 %v223
    %1180 = vmatprep.subr.mxu0 0.0
    %1181 = vmatpush1.msra.mxu0 0.0
    %1182 = vmatprep.subr.mxu0 0.0
    %1183 = vmatpush1.msra.mxu0 0.0
    %1184 = vmatprep.subr.mxu0 0.0
    %1185 = vmatpush1.msra.mxu0 0.0
    %1186 = vmatprep.subr.mxu0 0.0
    %1187 = vmatpush1.msra.mxu0 0.0
    %1188 = vmatprep.subr.mxu0 0.0
    %1189 = vmatpush1.msra.mxu0 0.0
    %1190 = vmatprep.subr.mxu0 0.0
    %1191 = vmatpush1.msra.mxu0 0.0
    %1192 = vmatprep.subr.mxu0 0.0
    %1193 = vmatpush1.msra.mxu0 0.0
    %1194 = vmatprep.subr.mxu0 0.0
    %1195 = vmatpush1.msra.mxu0 0.0
    %1196 = vmatprep.subr.mxu0 0.0
    %1197 = vmatpush1.msra.mxu0 0.0
    %1198 = vmatprep.subr.mxu0 0.0
    %1199 = vmatpush1.msra.mxu0 0.0
    %1200 = vmatprep.subr.mxu0 0.0
    %1201 = vmatpush1.msra.mxu0 0.0
    %1202 = vmatprep.subr.mxu0 0.0
    %1203 = vmatpush1.msra.mxu0 0.0
    %1204 = vmatprep.subr.mxu0 0.0
    %1205 = vmatpush1.msra.mxu0 0.0
    %1206 = vmatprep.subr.mxu0 0.0
    %1207 = vmatpush1.msra.mxu0 0.0
    %1208 = vmatprep.subr.mxu0 0.0
    %1209 = vmatpush1.msra.mxu0 0.0
    %1210 = vmatprep.subr.mxu0 0.0
    %1211 = vmatpush1.msra.mxu0 0.0
    %1212 = vmatprep.subr.mxu0 0.0
    %1213 = vmatpush1.msra.mxu0 0.0
    %1214 = vmatprep.subr.mxu0 0.0
    %1215 = vmatpush1.msra.mxu0 0.0
    %1216 = vmatprep.subr.mxu0 0.0
    %1217 = vmatpush1.msra.mxu0 0.0
    %1218 = vmatprep.subr.mxu0 0.0
    %1219 = vmatpush1.msra.mxu0 0.0
    %1220 = vmatprep.subr.mxu0 0.0
    %1221 = vmatpush1.msra.mxu0 0.0
    %1222 = vmatprep.subr.mxu0 0.0
    %1223 = vmatpush1.msra.mxu0 0.0
    %1224 = vmatprep.subr.mxu0 0.0
    %1225 = vmatpush1.msra.mxu0 0.0
    %1226 = vmatprep.subr.mxu0 0.0
    %1227 = vmatpush1.msra.mxu0 0.0
    %1228 = vmatprep.mubr.f32.mxu0 0.0
    %1229 = vmatmul.mubr.f32.gmra.mrb[0].mxu0 %v1162
    %v1230 = vpop.f32.mrb[0].mxu0
    %v1231 = vpop.f32.mrb[0].mxu0
    %v1232 = vadd.f32 0.0, %v1231
    %1233 = vdwg.mxu0
    %v1234 = vadd.f32 %v1232, %v333
    %v1235 = vmul.f32 %v71, %v1234
    %v1236 = vtanh.pop %v1235
    %v1237 = vmul.f32 %v71, %v1236
    %v1238 = vadd.f32 %v1237, %v72
    %v1239 = vmul.f32 %v1238, %v1123
    %1241 = vrot.lane.b32.xlu0 %v1238, 64
    %v1242 = vpop.permute.xlu0 %1241
    %v1244 = vmul.f32 %v1238, %v1242
    %1246 = vrot.lane.b32.xlu0 %v1244, 32
    %v1247 = vpop.permute.xlu0 %1246
    %v1249 = vadd.f32 %v1239, %v1247
    %v1250 = vtanh.pop %v1249
    %1252 = vrot.lane.b32.xlu0 %v1250, 64
    %v1253 = vpop.permute.xlu0 %1252
    %v1255 = vmul.f32 %v1238, %v1253
    %1256 = vrot.lane.b32.xlu0 %v875, 32
    %v1257 = vpop.permute.xlu0 %1256
    %1259 = vrot.lane.b32.xlu0 %v1129, 96
    %v1260 = vpop.permute.xlu0 %1259
    %v1262 = vsel %vm252, %v1257, %v1031
    %v1263 = vsel %vm254, %v1262, %v1260
    %v1264 = vsel %vm746, %v1263, %v1255
    %s1265 = scalar_lea.vmem [#allocation8], 8
    %1266 = vst [vmem:[%s1265] sm:$0xff] %v1264
    %1267 = vst.msk [vmem:[#allocation9] sm:$0xff] %vm252, %v1154
    %1269 = vrot.lane.b32.xlu0 %v1255, 32
    %v1270 = vpop.permute.xlu0 %1269
    %s1272 = scalar_lea.vmem [#allocation9], 8
    %1273 = vst.msk [vmem:[%s1272] sm:$0xff] %vm252, %v1270
    %1275 = vrot.lane.b32.xlu0 %v1145, 96
    %v1276 = vpop.permute.xlu0 %1275
    %1278 = vst.msk [vmem:[#allocation11] sm:$0xff] %vm252, %v1276
    %1280 = vrot.lane.b32.xlu0 %v1249, 96
    %v1281 = vpop.permute.xlu0 %1280
    %s1283 = scalar_lea.vmem [#allocation11], 8
    %1284 = vst.msk [vmem:[%s1283] sm:$0xff] %vm252, %v1281
    // Predicated region
    $region34: #{tpu_custom_call.1} parent=1 // pred_check
      _
    $region35: #{tpu_custom_call.1} parent=1 // pred_check_branch
      %1286 = sbr.rel (0) target = $region37
    $region36: #{tpu_custom_call.1} parent=1 // pred_region
      %s1288 = ssub.s32 256, 256
      %1289 = vsyncadd [#allocation4], %s1288
      %s1290 = sshll.u32 [#allocation8], 4
      %s1291 = int_to_ptr.vmem [resolvable:$true] %s1290
      %1296 = dma.vmem_to_hbm [thread:$0]  %s1291, 256, %s5, [#allocation4], 128, 128, 8
    $region37: #{tpu_custom_call.1} parent=1 // pred_fallthru
      _
    // Predicated region
    $region38: #{tpu_custom_call.1} parent=1 // pred_check
      _
    $region39: #{tpu_custom_call.1} parent=1 // pred_check_branch
      %1298 = sbr.rel (0) target = $region41
    $region40: #{tpu_custom_call.1} parent=1 // pred_region
      %s1300 = ssub.s32 256, 256
      %1301 = vsyncadd [#allocation10], %s1300
      %s1302 = sshll.u32 [#allocation9], 4
      %s1303 = int_to_ptr.vmem [resolvable:$true] %s1302
      %1308 = dma.vmem_to_hbm [thread:$0]  %s1303, 256, %s6, [#allocation10], 128, 128, 8
    $region41: #{tpu_custom_call.1} parent=1 // pred_fallthru
      _
    // Predicated region
    $region42: #{tpu_custom_call.1} parent=1 // pred_check
      _
    $region43: #{tpu_custom_call.1} parent=1 // pred_check_branch
      %1310 = sbr.rel (0) target = $region45
    $region44: #{tpu_custom_call.1} parent=1 // pred_region
      %s1312 = ssub.s32 256, 256
      %1313 = vsyncadd [#allocation10], %s1312
      %s1314 = sshll.u32 [#allocation11], 4
      %s1315 = int_to_ptr.vmem [resolvable:$true] %s1314
      %1320 = dma.vmem_to_hbm [thread:$0]  %s1315, 256, %s7, [#allocation10], 128, 128, 8
    $region45: #{tpu_custom_call.1} parent=1 // pred_fallthru
      _
    // Predicated region
    $region46: #{tpu_custom_call.1} parent=1 // pred_check
      _
    $region47: #{tpu_custom_call.1} parent=1 // pred_check_branch
      %1322 = sbr.rel (0) target = $region49
    $region48: #{tpu_custom_call.1} parent=1 // pred_region
      %1323 = dma.done [#allocation4], 256
    $region49: #{tpu_custom_call.1} parent=1 // pred_fallthru
      _
    // Predicated region
    $region50: #{tpu_custom_call.1} parent=1 // pred_check
      _
    $region51: #{tpu_custom_call.1} parent=1 // pred_check_branch
      %1325 = sbr.rel (0) target = $region53
    $region52: #{tpu_custom_call.1} parent=1 // pred_region
      %1326 = dma.done [#allocation10], 256
    $region53: #{tpu_custom_call.1} parent=1 // pred_fallthru
      _
    // Predicated region
    $region54: #{tpu_custom_call.1} parent=1 // pred_check
      _
    $region55: #{tpu_custom_call.1} parent=1 // pred_check_branch
      %1328 = sbr.rel (0) target = $region57
    $region56: #{tpu_custom_call.1} parent=1 // pred_region
      %1329 = dma.done [#allocation10], 256
    $region57: #{tpu_custom_call.1} parent=1 // pred_fallthru
      _
    %1330 = vsyncpa [#allocation3], 1
    %1331 = vsyncpa [#allocation6], 1
    %1332 = vsyncpa [#allocation4], 1
    %1333 = vsyncpa [#allocation10], 1

</llo_original>
